<compile_context>
chip_gen: v7x
topology: tpu7x:2x2x1
jax: 0.10.0
libtpu: 0.0.40
codegen_flags: <defaults>
</compile_context>

<pallas_src>
import numpy as np
import jax
import jax.numpy as jnp
from jax.experimental import pallas as pl
from jax.experimental.pallas import tpu as pltpu


# ----------------------------------------------------------------------------
# host-side helpers
# ----------------------------------------------------------------------------
def _centered_dft_matrix(n: int) -> np.ndarray:
    """Matrix of the sigpy/torch centered ortho FFT: fftshift(fft(ifftshift(x), ortho))."""
    eye = np.eye(n, dtype=np.complex64)
    f = np.fft.fftshift(
        np.fft.fft(np.fft.ifftshift(eye, axes=0), axis=0, norm="ortho"), axes=0)
    return f.astype(np.complex64)


def _round_up(x: int, m: int) -> int:
    return ((x + m - 1) // m) * m


_P_TILE_BUDGET = 4 * 1024 * 1024  # bytes per f32 plane of the on-chip P tile


def _choose_h_tile(h: int, w: int, k_tile: int) -> int:
    """Largest H tile whose on-chip P tile stays within budget and is layout-legal."""
    if h * w * k_tile * 4 <= _P_TILE_BUDGET:
        return h
    for h_t in range(h - 1, 0, -1):
        if h % h_t:
            continue
        if h_t % 8:                       # (8,128) sublane rule for the fh block
            continue
        if (h_t * w) % 128:               # lane rule for the img/sf HW blocks
            continue
        if h_t * w * k_tile * 4 <= _P_TILE_BUDGET:
            return h_t
    # TODO(synk): pad H (and W) to a layout-compatible size when no divisor works.
    return h


# ----------------------------------------------------------------------------
# kernel
# ----------------------------------------------------------------------------
def _svd_nufft_kernel(c_sel_ref,   # (M, C)          f32  : row m -> channel c(m)
                      s_sel_ref,   # (M, n_svd)      f32  : row m -> svd index s(m)
                      o_sel_ref,   # (C, M)          f32  : reduce-over-s selector
                      img_ref,     # (2, 1, C, HWt)  f32  re/im image block
                      sf_ref,      # (2, n_svd, HWt) f32  re/im spatial SVD funcs
                      fh_ref,      # (2, 1, Ht, Kt)  f32  gathered DFT-H rows (H-major)
                      fw_ref,      # (2, 1, W,  Kt)  f32  gathered DFT-W rows (W-major)
                      tf_ref,      # (2, 1, n_svd, Kt) f32 temporal funcs (pre-scaled)
                      out_ref):    # (2, 1, C, Kt)   f32  accumulated over H tiles
    ht = pl.program_id(2)

    @pl.when(ht == 0)
    def _():
        out_ref[...] = jnp.zeros_like(out_ref)

    c_sel = c_sel_ref[...]
    s_sel = s_sel_ref[...]
    o_sel = o_sel_ref[...]

    # ---- build the folded LHS  W[m, hw] = img[c(m), hw] * sf[s(m), hw]  on-chip
    ir = jnp.dot(c_sel, img_ref[0, 0], preferred_element_type=jnp.float32)  # (M, HWt)
    ii = jnp.dot(c_sel, img_ref[1, 0], preferred_element_type=jnp.float32)
    sr = jnp.dot(s_sel, sf_ref[0], preferred_element_type=jnp.float32)
    si = jnp.dot(s_sel, sf_ref[1], preferred_element_type=jnp.float32)
    wr = ir * sr - ii * si
    wi = ir * si + ii * sr

    # ---- form the P tile on-chip:  P[(h,w), k] = fh[h,k] * fw[w,k]
    ht_sz, kt_sz = fh_ref.shape[2], fh_ref.shape[3]
    w_sz = fw_ref.shape[2]
    fhr = fh_ref[0, 0][:, None, :]          # (Ht, 1, Kt)
    fhi = fh_ref[1, 0][:, None, :]
    fwr = fw_ref[0, 0][None, :, :]          # (1, W, Kt)
    fwi = fw_ref[1, 0][None, :, :]
    pr = (fhr * fwr - fhi * fwi).reshape(ht_sz * w_sz, kt_sz)   # (HWt, Kt)
    pi = (fhr * fwi + fhi * fwr).reshape(ht_sz * w_sz, kt_sz)

    # ---- bf16 operands + Gauss 3-multiply complex matmul, f32 MXU accumulation
    wr_b = wr.astype(jnp.bfloat16)
    wi_b = wi.astype(jnp.bfloat16)
    ws_b = (wr + wi).astype(jnp.bfloat16)
    pr_b = pr.astype(jnp.bfloat16)
    pi_b = pi.astype(jnp.bfloat16)
    ps_b = (pr + pi).astype(jnp.bfloat16)
    t1 = jnp.dot(wr_b, pr_b, preferred_element_type=jnp.float32)   # (M, Kt)
    t2 = jnp.dot(wi_b, pi_b, preferred_element_type=jnp.float32)
    t3 = jnp.dot(ws_b, ps_b, preferred_element_type=jnp.float32)
    kr = t1 - t2
    ki = t3 - t1 - t2

    # ---- temporal SVD weighting (expanded to the M rows) + reduction over s
    tr = jnp.dot(s_sel, tf_ref[0, 0], preferred_element_type=jnp.float32)   # (M, Kt)
    ti = jnp.dot(s_sel, tf_ref[1, 0], preferred_element_type=jnp.float32)
    yr = kr * tr - ki * ti
    yi = kr * ti + ki * tr
    out_ref[0, 0] += jnp.dot(o_sel, yr, preferred_element_type=jnp.float32)  # (C, Kt)
    out_ref[1, 0] += jnp.dot(o_sel, yi, preferred_element_type=jnp.float32)


# ----------------------------------------------------------------------------
# wrapper
# ----------------------------------------------------------------------------
def svd_nufft_forward(img, trj, spatial_funcs, temporal_funcs,
                      grid_oversamp: float = 1.0):
    """
    img            : (N, C, H, W)   complex64
    trj            : (N, K, 2)      int32   -- integer grid indices
    spatial_funcs  : (n_svd, H, W)  complex64
    temporal_funcs : (n_svd, N, K)  complex64
    returns        : (N, C, K)      complex64  (== torch svd_nufft.forward for N == 1)
    """
    # TODO(synk): grid_oversamp != 1.0 (centered zero padding to the os grid) not wired in.
    assert grid_oversamp == 1.0, "only grid_oversamp=1.0 (default, identity padding) supported"
    N, C, H, W = img.shape
    K = trj.shape[1]
    n_svd = spatial_funcs.shape[0]
    HW = H * W
    M = n_svd * C

    # ---- centered ortho DFT matrices and gathered rows (small: K*(H+W) per n)
    f_h = jnp.asarray(_centered_dft_matrix(H))                 # (H, H)
    f_w = jnp.asarray(_centered_dft_matrix(W))                 # (W, W)
    # explicit clamp (JAX gather clamps silently; torch indexing would error)
    trj_h = jnp.clip(trj[..., 0], 0, H - 1)
    trj_w = jnp.clip(trj[..., 1], 0, W - 1)
    fh_t = jnp.transpose(f_h[trj_h], (0, 2, 1))                # (N, H, K) complex
    fw_t = jnp.transpose(f_w[trj_w], (0, 2, 1))                # (N, W, K) complex

    # temporal funcs -> (N, n_svd, K), grid_oversamp folded in here
    tf = jnp.transpose(temporal_funcs, (1, 0, 2)) * grid_oversamp

    # ---- tiling (K tile multiple of 128; H tile sized for the on-chip P tile)
    k_tile = min(_round_up(K, 128), 1024)      # TODO(synk): per-chip sweep (~512 on v7x)
    k_pad = _round_up(K, k_tile)
    h_tile = _choose_h_tile(H, W, k_tile)
    n_kt = k_pad // k_tile
    n_ht = H // h_tile
    hw_tile = h_tile * W

    def pad_k(x):
        if k_pad == K:
            return x
        pad = [(0, 0)] * x.ndim
        pad[-1] = (0, k_pad - K)
        return jnp.pad(x, pad)

    def ri(x):  # complex -> packed (2, ...) float32 (re, im)
        return jnp.stack([jnp.real(x), jnp.imag(x)]).astype(jnp.float32)

    img_p = ri(img.reshape(N, C, HW))               # (2, N, C, HW)
    sf_p = ri(spatial_funcs.reshape(n_svd, HW))     # (2, n_svd, HW)
    fh_p = pad_k(ri(fh_t))                          # (2, N, H, K_pad)
    fw_p = pad_k(ri(fw_t))                          # (2, N, W, K_pad)
    tf_p = pad_k(ri(tf))                            # (2, N, n_svd, K_pad)

    # constant 0/1 selection matrices for the folded M = n_svd*C dimension
    m_idx = np.arange(M)
    c_sel = (m_idx[:, None] % C == np.arange(C)[None, :]).astype(np.float32)       # (M, C)
    s_sel = (m_idx[:, None] // C == np.arange(n_svd)[None, :]).astype(np.float32)  # (M, n_svd)
    o_sel = np.ascontiguousarray(c_sel.T)                                           # (C, M)
    c_sel, s_sel, o_sel = map(jnp.asarray, (c_sel, s_sel, o_sel))

    grid_spec = pltpu.PrefetchScalarGridSpec(
        num_scalar_prefetch=0,
        grid=(N, n_kt, n_ht),                        # H-tile reduction axis innermost
        in_specs=[
            pl.BlockSpec((M, C), lambda n, kt, ht: (0, 0)),
            pl.BlockSpec((M, n_svd), lambda n, kt, ht: (0, 0)),
            pl.BlockSpec((C, M), lambda n, kt, ht: (0, 0)),
            pl.BlockSpec((2, 1, C, hw_tile), lambda n, kt, ht: (0, n, 0, ht)),
            pl.BlockSpec((2, n_svd, hw_tile), lambda n, kt, ht: (0, 0, ht)),
            pl.BlockSpec((2, 1, h_tile, k_tile), lambda n, kt, ht: (0, n, ht, kt)),
            pl.BlockSpec((2, 1, W, k_tile), lambda n, kt, ht: (0, n, 0, kt)),
            pl.BlockSpec((2, 1, n_svd, k_tile), lambda n, kt, ht: (0, n, 0, kt)),
        ],
        out_specs=pl.BlockSpec((2, 1, C, k_tile), lambda n, kt, ht: (0, n, 0, kt)),
    )

    out = pl.pallas_call(
        _svd_nufft_kernel,
        grid_spec=grid_spec,
        out_shape=jax.ShapeDtypeStruct((2, N, C, k_pad), jnp.float32),
        compiler_params=pltpu.CompilerParams(
            dimension_semantics=("parallel", "parallel", "arbitrary"),
            vmem_limit_bytes=48 * 1024 * 1024),
    )(c_sel, s_sel, o_sel, img_p, sf_p, fh_p, fw_p, tf_p)

    out = out[..., :K]                               # drop padded trajectory columns
    return (out[0] + 1j * out[1]).astype(jnp.complex64)


# ----------------------------------------------------------------------------
# pure-JAX reference (transcription of torch svd_nufft.forward, grid_oversamp=1)
# ----------------------------------------------------------------------------
def _reference_forward(img, trj, spatial_funcs, temporal_funcs, grid_oversamp=1.0):
    N = img.shape[0]
    x = img[:, None] * spatial_funcs[None, :, None]                 # (N, n_svd, C, H, W)
    k = jnp.fft.fftshift(
        jnp.fft.fftn(jnp.fft.ifftshift(x, axes=(-2, -1)), axes=(-2, -1), norm="ortho"),
        axes=(-2, -1))
    ksp = jnp.stack([k[n][..., trj[n, :, 0], trj[n, :, 1]] for n in range(N)])  # (N, n_svd, C, K)
    tf = temporal_funcs
    empty_dims = ksp.ndim - tf.ndim - 1
    tup = (None, slice(None)) + (None,) * empty_dims + (slice(None),) * (tf.ndim - 1)
    out = (ksp * tf[tup]).sum(1)
    return out * grid_oversamp


if __name__ == "__main__":
    # N must be 1 (the torch module's temporal broadcast is only well defined then).
    N, C, H, W = 1, 4, 16, 16
    K = 128            # number of trajectory points (trj_batch)
    n_svd = 5
    grid_oversamp = 1.0

    key = jax.random.PRNGKey(0)
    k1, k2, k3, k4, k5, k6, k7 = jax.random.split(key, 7)

    img = (jax.random.normal(k1, (N, C, H, W), jnp.float32)
           + 1j * jax.random.normal(k2, (N, C, H, W), jnp.float32)).astype(jnp.complex64)
    # integer grid indices, i.e. the output of rescale_trajectory
    trj = jnp.stack([jax.random.randint(k3, (N, K), 0, H),
                     jax.random.randint(k4, (N, K), 0, W)], axis=-1).astype(jnp.int32)
    # deterministic synthetic SVD "parameters" (compute_svd_funcs is not reproduced here)
    spatial_funcs = (jax.random.normal(k5, (n_svd, H, W), jnp.float32)
                     + 1j * jax.random.normal(k6, (n_svd, H, W), jnp.float32)
                     ).astype(jnp.complex64) * 0.5
    temporal_funcs = (jax.random.normal(k7, (n_svd, N, K), jnp.float32)
                      + 1j * jax.random.normal(k1, (n_svd, N, K), jnp.float32)
                      ).astype(jnp.complex64) * 0.5

    out = svd_nufft_forward(img, trj, spatial_funcs, temporal_funcs, grid_oversamp)
    out = jax.block_until_ready(out)

    ref = _reference_forward(img, trj, spatial_funcs, temporal_funcs, grid_oversamp)
    # bf16 MXU operands (f32 accumulation): expect ~1e-2 worst-case absolute error
    # on O(1)-magnitude outputs; tolerance set with margin.
    np.testing.assert_allclose(np.asarray(out), np.asarray(ref), atol=5e-2, rtol=5e-2)

    print("KERNEL_OK")
</pallas_src>

<mosaic_0001>
module attributes {stable_mosaic.version = 11 : i64} {
  func.func @_svd_nufft_kernel(%arg0: i32, %arg1: i32, %arg2: i32, %arg3: memref<20x4xf32, #tpu.memory_space<vmem>>, %arg4: memref<20x5xf32, #tpu.memory_space<vmem>>, %arg5: memref<4x20xf32, #tpu.memory_space<vmem>>, %arg6: memref<2x1x4x256xf32, #tpu.memory_space<vmem>>, %arg7: memref<2x5x256xf32, #tpu.memory_space<vmem>>, %arg8: memref<2x1x16x128xf32, #tpu.memory_space<vmem>>, %arg9: memref<2x1x16x128xf32, #tpu.memory_space<vmem>>, %arg10: memref<2x1x5x128xf32, #tpu.memory_space<vmem>>, %arg11: memref<2x1x4x128xf32, #tpu.memory_space<vmem>>) attributes {dimension_semantics = [#tpu.dimension_semantics<parallel>, #tpu.dimension_semantics<parallel>, #tpu.dimension_semantics<arbitrary>], iteration_bounds = array<i64: 1, 1, 1>, scalar_prefetch = 0 : i64, scratch_operands = 0 : i64, tpu.core_type = #tpu.core_type<tc>, window_params = [{pipeline_mode = #tpu.pipeline_mode<synchronous>, transform_indices = @transform_0, window_bounds = array<i64: 20, 4>}, {pipeline_mode = #tpu.pipeline_mode<synchronous>, transform_indices = @transform_1, window_bounds = array<i64: 20, 5>}, {pipeline_mode = #tpu.pipeline_mode<synchronous>, transform_indices = @transform_2, window_bounds = array<i64: 4, 20>}, {transform_indices = @transform_3, window_bounds = array<i64: 2, 1, 4, 256>}, {transform_indices = @transform_4, window_bounds = array<i64: 2, 5, 256>}, {transform_indices = @transform_5, window_bounds = array<i64: 2, 1, 16, 128>}, {transform_indices = @transform_6, window_bounds = array<i64: 2, 1, 16, 128>}, {transform_indices = @transform_7, window_bounds = array<i64: 2, 1, 5, 128>}, {transform_indices = @transform_8, window_bounds = array<i64: 2, 1, 4, 128>}]} {
    %c0_i32 = arith.constant 0 : i32
    %0 = arith.cmpi eq, %arg2, %c0_i32 : i32
    %1 = arith.extui %0 : i1 to i32
    %c0_i32_0 = arith.constant 0 : i32
    %2 = arith.cmpi ne, %1, %c0_i32_0 : i32
    scf.if %2 {
      %cst_69 = arith.constant 0.000000e+00 : f32
      %92 = vector.broadcast %cst_69 : f32 to vector<2x1x4x128xf32>
      %c0_70 = arith.constant 0 : index
      %c0_71 = arith.constant 0 : index
      %c0_72 = arith.constant 0 : index
      %c0_73 = arith.constant 0 : index
      %93 = vector.load %arg11[%c0_70, %c0_71, %c0_72, %c0_73] : memref<2x1x4x128xf32, #tpu.memory_space<vmem>>, vector<2x1x4x128xf32>
      tpu.vector_store %arg11[%c0_70, %c0_71, %c0_72, %c0_73], %92 {strides = array<i32>} : memref<2x1x4x128xf32, #tpu.memory_space<vmem>>, vector<2x1x4x128xf32>,
    } else {
    }
    %c0 = arith.constant 0 : index
    %c0_1 = arith.constant 0 : index
    %3 = vector.load %arg3[%c0, %c0_1] : memref<20x4xf32, #tpu.memory_space<vmem>>, vector<20x4xf32>
    %c0_2 = arith.constant 0 : index
    %c0_3 = arith.constant 0 : index
    %4 = vector.load %arg4[%c0_2, %c0_3] : memref<20x5xf32, #tpu.memory_space<vmem>>, vector<20x5xf32>
    %c0_4 = arith.constant 0 : index
    %c0_5 = arith.constant 0 : index
    %5 = vector.load %arg5[%c0_4, %c0_5] : memref<4x20xf32, #tpu.memory_space<vmem>>, vector<4x20xf32>
    %c0_6 = arith.constant 0 : index
    %c0_7 = arith.constant 0 : index
    %c0_8 = arith.constant 0 : index
    %c0_9 = arith.constant 0 : index
    %6 = vector.load %arg6[%c0_6, %c0_7, %c0_8, %c0_9] : memref<2x1x4x256xf32, #tpu.memory_space<vmem>>, vector<1x1x4x256xf32>
    %7 = vector.shape_cast %6 : vector<1x1x4x256xf32> to vector<4x256xf32>
    %cst = arith.constant dense<0.000000e+00> : vector<20x256xf32>
    %8 = tpu.matmul %3, %7, %cst {dimension_numbers = #tpu.dot_dimension_numbers<[1], [0], [0], [1], [0, 0, 1, 1], [], []>} : vector<20x4xf32>, vector<4x256xf32>, vector<20x256xf32> -> vector<20x256xf32>
    %c1 = arith.constant 1 : index
    %c0_10 = arith.constant 0 : index
    %c0_11 = arith.constant 0 : index
    %c0_12 = arith.constant 0 : index
    %9 = vector.load %arg6[%c1, %c0_10, %c0_11, %c0_12] : memref<2x1x4x256xf32, #tpu.memory_space<vmem>>, vector<1x1x4x256xf32>
    %10 = vector.shape_cast %9 : vector<1x1x4x256xf32> to vector<4x256xf32>
    %cst_13 = arith.constant dense<0.000000e+00> : vector<20x256xf32>
    %11 = tpu.matmul %3, %10, %cst_13 {dimension_numbers = #tpu.dot_dimension_numbers<[1], [0], [0], [1], [0, 0, 1, 1], [], []>} : vector<20x4xf32>, vector<4x256xf32>, vector<20x256xf32> -> vector<20x256xf32>
    %c0_14 = arith.constant 0 : index
    %c0_15 = arith.constant 0 : index
    %c0_16 = arith.constant 0 : index
    %12 = vector.load %arg7[%c0_14, %c0_15, %c0_16] : memref<2x5x256xf32, #tpu.memory_space<vmem>>, vector<1x5x256xf32>
    %13 = vector.shape_cast %12 : vector<1x5x256xf32> to vector<5x256xf32>
    %cst_17 = arith.constant dense<0.000000e+00> : vector<20x256xf32>
    %14 = tpu.matmul %4, %13, %cst_17 {dimension_numbers = #tpu.dot_dimension_numbers<[1], [0], [0], [1], [0, 0, 1, 1], [], []>} : vector<20x5xf32>, vector<5x256xf32>, vector<20x256xf32> -> vector<20x256xf32>
    %c1_18 = arith.constant 1 : index
    %c0_19 = arith.constant 0 : index
    %c0_20 = arith.constant 0 : index
    %15 = vector.load %arg7[%c1_18, %c0_19, %c0_20] : memref<2x5x256xf32, #tpu.memory_space<vmem>>, vector<1x5x256xf32>
    %16 = vector.shape_cast %15 : vector<1x5x256xf32> to vector<5x256xf32>
    %cst_21 = arith.constant dense<0.000000e+00> : vector<20x256xf32>
    %17 = tpu.matmul %4, %16, %cst_21 {dimension_numbers = #tpu.dot_dimension_numbers<[1], [0], [0], [1], [0, 0, 1, 1], [], []>} : vector<20x5xf32>, vector<5x256xf32>, vector<20x256xf32> -> vector<20x256xf32>
    %18 = arith.mulf %8, %14 : vector<20x256xf32>
    %19 = arith.mulf %11, %17 : vector<20x256xf32>
    %20 = arith.subf %18, %19 : vector<20x256xf32>
    %21 = arith.mulf %8, %17 : vector<20x256xf32>
    %22 = arith.mulf %11, %14 : vector<20x256xf32>
    %23 = arith.addf %21, %22 : vector<20x256xf32>
    %c0_22 = arith.constant 0 : index
    %c0_23 = arith.constant 0 : index
    %c0_24 = arith.constant 0 : index
    %c0_25 = arith.constant 0 : index
    %24 = vector.load %arg8[%c0_22, %c0_23, %c0_24, %c0_25] : memref<2x1x16x128xf32, #tpu.memory_space<vmem>>, vector<1x1x16x128xf32>
    %25 = vector.shape_cast %24 : vector<1x1x16x128xf32> to vector<16x128xf32>
    %26 = vector.shape_cast %25 : vector<16x128xf32> to vector<16x1x128xf32>
    %c1_26 = arith.constant 1 : index
    %c0_27 = arith.constant 0 : index
    %c0_28 = arith.constant 0 : index
    %c0_29 = arith.constant 0 : index
    %27 = vector.load %arg8[%c1_26, %c0_27, %c0_28, %c0_29] : memref<2x1x16x128xf32, #tpu.memory_space<vmem>>, vector<1x1x16x128xf32>
    %28 = vector.shape_cast %27 : vector<1x1x16x128xf32> to vector<16x128xf32>
    %29 = vector.shape_cast %28 : vector<16x128xf32> to vector<16x1x128xf32>
    %c0_30 = arith.constant 0 : index
    %c0_31 = arith.constant 0 : index
    %c0_32 = arith.constant 0 : index
    %c0_33 = arith.constant 0 : index
    %30 = vector.load %arg9[%c0_30, %c0_31, %c0_32, %c0_33] : memref<2x1x16x128xf32, #tpu.memory_space<vmem>>, vector<1x1x16x128xf32>
    %31 = vector.shape_cast %30 : vector<1x1x16x128xf32> to vector<16x128xf32>
    %32 = vector.shape_cast %31 : vector<16x128xf32> to vector<1x16x128xf32>
    %c1_34 = arith.constant 1 : index
    %c0_35 = arith.constant 0 : index
    %c0_36 = arith.constant 0 : index
    %c0_37 = arith.constant 0 : index
    %33 = vector.load %arg9[%c1_34, %c0_35, %c0_36, %c0_37] : memref<2x1x16x128xf32, #tpu.memory_space<vmem>>, vector<1x1x16x128xf32>
    %34 = vector.shape_cast %33 : vector<1x1x16x128xf32> to vector<16x128xf32>
    %35 = vector.shape_cast %34 : vector<16x128xf32> to vector<1x16x128xf32>
    %36 = vector.broadcast %26 : vector<16x1x128xf32> to vector<16x16x128xf32>
    %37 = vector.broadcast %32 : vector<1x16x128xf32> to vector<16x16x128xf32>
    %38 = arith.mulf %36, %37 : vector<16x16x128xf32>
    %39 = vector.broadcast %29 : vector<16x1x128xf32> to vector<16x16x128xf32>
    %40 = vector.broadcast %35 : vector<1x16x128xf32> to vector<16x16x128xf32>
    %41 = arith.mulf %39, %40 : vector<16x16x128xf32>
    %42 = arith.subf %38, %41 : vector<16x16x128xf32>
    %43 = vector.shape_cast %42 : vector<16x16x128xf32> to vector<256x128xf32>
    %44 = vector.broadcast %26 : vector<16x1x128xf32> to vector<16x16x128xf32>
    %45 = vector.broadcast %35 : vector<1x16x128xf32> to vector<16x16x128xf32>
    %46 = arith.mulf %44, %45 : vector<16x16x128xf32>
    %47 = vector.broadcast %29 : vector<16x1x128xf32> to vector<16x16x128xf32>
    %48 = vector.broadcast %32 : vector<1x16x128xf32> to vector<16x16x128xf32>
    %49 = arith.mulf %47, %48 : vector<16x16x128xf32>
    %50 = arith.addf %46, %49 : vector<16x16x128xf32>
    %51 = vector.shape_cast %50 : vector<16x16x128xf32> to vector<256x128xf32>
    %52 = arith.truncf %20 : vector<20x256xf32> to vector<20x256xbf16>
    %53 = arith.truncf %23 : vector<20x256xf32> to vector<20x256xbf16>
    %54 = arith.addf %20, %23 : vector<20x256xf32>
    %55 = arith.truncf %54 : vector<20x256xf32> to vector<20x256xbf16>
    %56 = arith.truncf %43 : vector<256x128xf32> to vector<256x128xbf16>
    %57 = arith.truncf %51 : vector<256x128xf32> to vector<256x128xbf16>
    %58 = arith.addf %43, %51 : vector<256x128xf32>
    %59 = arith.truncf %58 : vector<256x128xf32> to vector<256x128xbf16>
    %cst_38 = arith.constant dense<0.000000e+00> : vector<20x128xf32>
    %60 = tpu.matmul %52, %56, %cst_38 {dimension_numbers = #tpu.dot_dimension_numbers<[1], [0], [0], [1], [0, 0, 1, 1], [], []>} : vector<20x256xbf16>, vector<256x128xbf16>, vector<20x128xf32> -> vector<20x128xf32>
    %cst_39 = arith.constant dense<0.000000e+00> : vector<20x128xf32>
    %61 = tpu.matmul %53, %57, %cst_39 {dimension_numbers = #tpu.dot_dimension_numbers<[1], [0], [0], [1], [0, 0, 1, 1], [], []>} : vector<20x256xbf16>, vector<256x128xbf16>, vector<20x128xf32> -> vector<20x128xf32>
    %cst_40 = arith.constant dense<0.000000e+00> : vector<20x128xf32>
    %62 = tpu.matmul %55, %59, %cst_40 {dimension_numbers = #tpu.dot_dimension_numbers<[1], [0], [0], [1], [0, 0, 1, 1], [], []>} : vector<20x256xbf16>, vector<256x128xbf16>, vector<20x128xf32> -> vector<20x128xf32>
    %63 = arith.subf %60, %61 : vector<20x128xf32>
    %64 = arith.subf %62, %60 : vector<20x128xf32>
    %65 = arith.subf %64, %61 : vector<20x128xf32>
    %c0_41 = arith.constant 0 : index
    %c0_42 = arith.constant 0 : index
    %c0_43 = arith.constant 0 : index
    %c0_44 = arith.constant 0 : index
    %66 = vector.load %arg10[%c0_41, %c0_42, %c0_43, %c0_44] : memref<2x1x5x128xf32, #tpu.memory_space<vmem>>, vector<1x1x5x128xf32>
    %67 = vector.shape_cast %66 : vector<1x1x5x128xf32> to vector<5x128xf32>
    %cst_45 = arith.constant dense<0.000000e+00> : vector<20x128xf32>
    %68 = tpu.matmul %4, %67, %cst_45 {dimension_numbers = #tpu.dot_dimension_numbers<[1], [0], [0], [1], [0, 0, 1, 1], [], []>} : vector<20x5xf32>, vector<5x128xf32>, vector<20x128xf32> -> vector<20x128xf32>
    %c1_46 = arith.constant 1 : index
    %c0_47 = arith.constant 0 : index
    %c0_48 = arith.constant 0 : index
    %c0_49 = arith.constant 0 : index
    %69 = vector.load %arg10[%c1_46, %c0_47, %c0_48, %c0_49] : memref<2x1x5x128xf32, #tpu.memory_space<vmem>>, vector<1x1x5x128xf32>
    %70 = vector.shape_cast %69 : vector<1x1x5x128xf32> to vector<5x128xf32>
    %cst_50 = arith.constant dense<0.000000e+00> : vector<20x128xf32>
    %71 = tpu.matmul %4, %70, %cst_50 {dimension_numbers = #tpu.dot_dimension_numbers<[1], [0], [0], [1], [0, 0, 1, 1], [], []>} : vector<20x5xf32>, vector<5x128xf32>, vector<20x128xf32> -> vector<20x128xf32>
    %72 = arith.mulf %63, %68 : vector<20x128xf32>
    %73 = arith.mulf %65, %71 : vector<20x128xf32>
    %74 = arith.subf %72, %73 : vector<20x128xf32>
    %75 = arith.mulf %63, %71 : vector<20x128xf32>
    %76 = arith.mulf %65, %68 : vector<20x128xf32>
    %77 = arith.addf %75, %76 : vector<20x128xf32>
    %c0_51 = arith.constant 0 : index
    %c0_52 = arith.constant 0 : index
    %c0_53 = arith.constant 0 : index
    %c0_54 = arith.constant 0 : index
    %78 = vector.load %arg11[%c0_51, %c0_52, %c0_53, %c0_54] : memref<2x1x4x128xf32, #tpu.memory_space<vmem>>, vector<1x1x4x128xf32>
    %79 = vector.shape_cast %78 : vector<1x1x4x128xf32> to vector<4x128xf32>
    %cst_55 = arith.constant dense<0.000000e+00> : vector<4x128xf32>
    %80 = tpu.matmul %5, %74, %cst_55 {dimension_numbers = #tpu.dot_dimension_numbers<[1], [0], [0], [1], [0, 0, 1, 1], [], []>} : vector<4x20xf32>, vector<20x128xf32>, vector<4x128xf32> -> vector<4x128xf32>
    %81 = arith.addf %79, %80 : vector<4x128xf32>
    %c0_56 = arith.constant 0 : index
    %c0_57 = arith.constant 0 : index
    %c0_58 = arith.constant 0 : index
    %c0_59 = arith.constant 0 : index
    %82 = vector.load %arg11[%c0_56, %c0_57, %c0_58, %c0_59] : memref<2x1x4x128xf32, #tpu.memory_space<vmem>>, vector<1x1x4x128xf32>
    %83 = vector.shape_cast %82 : vector<1x1x4x128xf32> to vector<4x128xf32>
    %84 = vector.shape_cast %81 : vector<4x128xf32> to vector<1x1x4x128xf32>
    tpu.vector_store %arg11[%c0_56, %c0_57, %c0_58, %c0_59], %84 {strides = array<i32>} : memref<2x1x4x128xf32, #tpu.memory_space<vmem>>, vector<1x1x4x128xf32>,
    %c1_60 = arith.constant 1 : index
    %c0_61 = arith.constant 0 : index
    %c0_62 = arith.constant 0 : index
    %c0_63 = arith.constant 0 : index
    %85 = vector.load %arg11[%c1_60, %c0_61, %c0_62, %c0_63] : memref<2x1x4x128xf32, #tpu.memory_space<vmem>>, vector<1x1x4x128xf32>
    %86 = vector.shape_cast %85 : vector<1x1x4x128xf32> to vector<4x128xf32>
    %cst_64 = arith.constant dense<0.000000e+00> : vector<4x128xf32>
    %87 = tpu.matmul %5, %77, %cst_64 {dimension_numbers = #tpu.dot_dimension_numbers<[1], [0], [0], [1], [0, 0, 1, 1], [], []>} : vector<4x20xf32>, vector<20x128xf32>, vector<4x128xf32> -> vector<4x128xf32>
    %88 = arith.addf %86, %87 : vector<4x128xf32>
    %c1_65 = arith.constant 1 : index
    %c0_66 = arith.constant 0 : index
    %c0_67 = arith.constant 0 : index
    %c0_68 = arith.constant 0 : index
    %89 = vector.load %arg11[%c1_65, %c0_66, %c0_67, %c0_68] : memref<2x1x4x128xf32, #tpu.memory_space<vmem>>, vector<1x1x4x128xf32>
    %90 = vector.shape_cast %89 : vector<1x1x4x128xf32> to vector<4x128xf32>
    %91 = vector.shape_cast %88 : vector<4x128xf32> to vector<1x1x4x128xf32>
    tpu.vector_store %arg11[%c1_65, %c0_66, %c0_67, %c0_68], %91 {strides = array<i32>} : memref<2x1x4x128xf32, #tpu.memory_space<vmem>>, vector<1x1x4x128xf32>,
    return
  }
  func.func @transform_0(%arg0: i32, %arg1: i32, %arg2: i32) -> (i32, i32) {
    %c0_i32 = arith.constant 0 : i32
    %c0_i32_0 = arith.constant 0 : i32
    %c0_i32_1 = arith.constant 0 : i32
    return %c0_i32, %c0_i32_0 : i32, i32
  }
  func.func @transform_1(%arg0: i32, %arg1: i32, %arg2: i32) -> (i32, i32) {
    %c0_i32 = arith.constant 0 : i32
    %c0_i32_0 = arith.constant 0 : i32
    %c0_i32_1 = arith.constant 0 : i32
    return %c0_i32, %c0_i32_0 : i32, i32
  }
  func.func @transform_2(%arg0: i32, %arg1: i32, %arg2: i32) -> (i32, i32) {
    %c0_i32 = arith.constant 0 : i32
    %c0_i32_0 = arith.constant 0 : i32
    %c0_i32_1 = arith.constant 0 : i32
    return %c0_i32, %c0_i32_0 : i32, i32
  }
  func.func @transform_3(%arg0: i32, %arg1: i32, %arg2: i32) -> (i32, i32, i32, i32) {
    %c0_i32 = arith.constant 0 : i32
    %c0_i32_0 = arith.constant 0 : i32
    %c0_i32_1 = arith.constant 0 : i32
    return %c0_i32, %arg0, %c0_i32_0, %arg2 : i32, i32, i32, i32
  }
  func.func @transform_4(%arg0: i32, %arg1: i32, %arg2: i32) -> (i32, i32, i32) {
    %c0_i32 = arith.constant 0 : i32
    %c0_i32_0 = arith.constant 0 : i32
    %c0_i32_1 = arith.constant 0 : i32
    return %c0_i32, %c0_i32_0, %arg2 : i32, i32, i32
  }
  func.func @transform_5(%arg0: i32, %arg1: i32, %arg2: i32) -> (i32, i32, i32, i32) {
    %c0_i32 = arith.constant 0 : i32
    %c0_i32_0 = arith.constant 0 : i32
    return %c0_i32, %arg0, %arg2, %arg1 : i32, i32, i32, i32
  }
  func.func @transform_6(%arg0: i32, %arg1: i32, %arg2: i32) -> (i32, i32, i32, i32) {
    %c0_i32 = arith.constant 0 : i32
    %c0_i32_0 = arith.constant 0 : i32
    %c0_i32_1 = arith.constant 0 : i32
    return %c0_i32, %arg0, %c0_i32_0, %arg1 : i32, i32, i32, i32
  }
  func.func @transform_7(%arg0: i32, %arg1: i32, %arg2: i32) -> (i32, i32, i32, i32) {
    %c0_i32 = arith.constant 0 : i32
    %c0_i32_0 = arith.constant 0 : i32
    %c0_i32_1 = arith.constant 0 : i32
    return %c0_i32, %arg0, %c0_i32_0, %arg1 : i32, i32, i32, i32
  }
  func.func @transform_8(%arg0: i32, %arg1: i32, %arg2: i32) -> (i32, i32, i32, i32) {
    %c0_i32 = arith.constant 0 : i32
    %c0_i32_0 = arith.constant 0 : i32
    %c0_i32_1 = arith.constant 0 : i32
    return %c0_i32, %arg0, %c0_i32_0, %arg1 : i32, i32, i32, i32
  }
}

</mosaic_0001>

<llo_original>
// kernel: tpu_custom_call.1
$region0: #{tpu_custom_call.1}
  #allocation0 [shape = 'u32[]', space=smem, size = 0x4, offset = 0x4, fixed_abs, tag = 'smem constant byte address 0x4 - core index']
  #allocation1 [shape = 'u32[144,128]{1,0:T(1,128)}', space=vmem, size = 0x12000, scoped, tag = 'internal scratch']
  %s0 = inlined_call_operand.vmem [shape: f32[20,4], index: 0, kind: input, shape index: {}]
  %s1 = inlined_call_operand.vmem [shape: f32[20,5], index: 1, kind: input, shape index: {}]
  %s2 = inlined_call_operand.vmem [shape: f32[4,20], index: 2, kind: input, shape index: {}]
  %s3 = inlined_call_operand.vmem [shape: f32[2,1,4,256], index: 3, kind: input, shape index: {}]
  %s4 = inlined_call_operand.vmem [shape: f32[2,5,256], index: 4, kind: input, shape index: {}]
  %s5 = inlined_call_operand.vmem [shape: f32[2,1,16,128], index: 5, kind: input, shape index: {}]
  %s6 = inlined_call_operand.vmem [shape: f32[2,1,16,128], index: 6, kind: input, shape index: {}]
  %s7 = inlined_call_operand.vmem [shape: f32[2,1,5,128], index: 7, kind: input, shape index: {}]
  %s8 = inlined_call_operand.hbm [shape: f32[2,1,4,128], index: 8, kind: output, shape index: {}]
  %s9 = sld [smem:[#allocation0]]
  $region46: #{tpu_custom_call.1} parent=0
    _
  %s11 = ssub.s32 1, %s9
  %s12 = scalar_select 0, %s11, %s9
  $region1: #{tpu_custom_call.1} parent=0
    #allocation2 [shape = 'u8[4096]{0}', space=vmem, size = 0x1000, scoped, tag = 'output window, operand 0, single buffered']
    #allocation3 [shape = 's32[1]{0}', space=sflag, size = 0x4, scoped, tag = 'scoped memory for tpu_custom_call.1']
    %13 = vsyncpa [#allocation3], 0
    // Predicated region
    $region2: #{tpu_custom_call.1} parent=1 // pred_check
      _
    $region3: #{tpu_custom_call.1} parent=1 // pred_check_branch
      %15 = sbr.rel (0) target = $region5
    $region4: #{tpu_custom_call.1} parent=1 // pred_region
      _
    $region5: #{tpu_custom_call.1} parent=1 // pred_fallthru
      _
    // Predicated region
    $region6: #{tpu_custom_call.1} parent=1 // pred_check
      _
    $region7: #{tpu_custom_call.1} parent=1 // pred_check_branch
      %17 = sbr.rel (0) target = $region9
    $region8: #{tpu_custom_call.1} parent=1 // pred_region
      _
    $region9: #{tpu_custom_call.1} parent=1 // pred_fallthru
      _
    // Predicated region
    $region10: #{tpu_custom_call.1} parent=1 // pred_check
      _
    $region11: #{tpu_custom_call.1} parent=1 // pred_check_branch
      %19 = sbr.rel (0) target = $region13
    $region12: #{tpu_custom_call.1} parent=1 // pred_region
      _
    $region13: #{tpu_custom_call.1} parent=1 // pred_fallthru
      _
    // Predicated region
    $region14: #{tpu_custom_call.1} parent=1 // pred_check
      _
    $region15: #{tpu_custom_call.1} parent=1 // pred_check_branch
      %21 = sbr.rel (0) target = $region17
    $region16: #{tpu_custom_call.1} parent=1 // pred_region
      _
    $region17: #{tpu_custom_call.1} parent=1 // pred_fallthru
      _
    // Predicated region
    $region18: #{tpu_custom_call.1} parent=1 // pred_check
      _
    $region19: #{tpu_custom_call.1} parent=1 // pred_check_branch
      %23 = sbr.rel (0) target = $region21
    $region20: #{tpu_custom_call.1} parent=1 // pred_region
      _
    $region21: #{tpu_custom_call.1} parent=1 // pred_fallthru
      _
    // Predicated region
    $region22: #{tpu_custom_call.1} parent=1 // pred_check
      _
    $region23: #{tpu_custom_call.1} parent=1 // pred_check_branch
      %25 = sbr.rel (0) target = $region25
    $region24: #{tpu_custom_call.1} parent=1 // pred_region
      _
    $region25: #{tpu_custom_call.1} parent=1 // pred_fallthru
      _
    // Predicated region
    $region26: #{tpu_custom_call.1} parent=1 // pred_check
      _
    $region27: #{tpu_custom_call.1} parent=1 // pred_check_branch
      %27 = sbr.rel (0) target = $region29
    $region28: #{tpu_custom_call.1} parent=1 // pred_region
      _
    $region29: #{tpu_custom_call.1} parent=1 // pred_fallthru
      _
    // Predicated region
    $region30: #{tpu_custom_call.1} parent=1 // pred_check
      _
    $region31: #{tpu_custom_call.1} parent=1 // pred_check_branch
      %29 = sbr.rel (0) target = $region33
    $region32: #{tpu_custom_call.1} parent=1 // pred_region
      _
    $region33: #{tpu_custom_call.1} parent=1 // pred_fallthru
      _
    %p31 = scmp.eq.s32.totalorder 0, 0
    // Predicated region
    $region34: #{tpu_custom_call.1} parent=1 // pred_check
      %p32 = pneg %p31
    $region35: #{tpu_custom_call.1} parent=1 // pred_check_branch
      %34 = sbr.rel (%p32) target = $region37
    $region36: #{tpu_custom_call.1} parent=1 // pred_region
      %35 = vst [vmem:[#allocation2] sm:$0xf] 0.0
      %36 = vst [vmem:[#allocation2 + $0x4] sm:$0xf] 0.0
    $region37: #{tpu_custom_call.1} parent=1 // pred_fallthru
      _
    %v37 = vld [vmem:[%s0] sm:$0xff]
    %v38 = vld [vmem:[%s0 + $0x8] sm:$0xff]
    %v39 = vld [vmem:[%s0 + $0x10] sm:$0xf]
    %v40 = vld [vmem:[%s1] sm:$0xff]
    %v41 = vld [vmem:[%s1 + $0x8] sm:$0xff]
    %v42 = vld [vmem:[%s1 + $0x10] sm:$0xf]
    %v43 = vld [vmem:[%s2] sm:$0xf]
    %v44 = vld [vmem:[%s3] sm:$0xff]
    %v46 = vcombine.high %v44, %v44
    %vm47 = vcmask 31744
    %v49 = vsel %vm47, %v37, 0
    %v52 = vsel %vm47, %v38, 0
    %v55 = vsel %vm47, %v39, 0
    %vm57 = vcmask 1043456
    %v58 = vsel %vm57, %v44, 0
    %v60 = vsel %vm57, %v46, 0
    %62 = vmatprep.subr.mxu0 %v60
    %63 = vmatpush1.msra.mxu0 %v58
    %64 = vmatprep.subr.mxu0 0.0
    %65 = vmatpush1.msra.mxu0 0.0
    %66 = vmatprep.subr.mxu0 0.0
    %67 = vmatpush1.msra.mxu0 0.0
    %68 = vmatprep.subr.mxu0 0.0
    %69 = vmatpush1.msra.mxu0 0.0
    %70 = vmatprep.subr.mxu0 0.0
    %71 = vmatpush1.msra.mxu0 0.0
    %72 = vmatprep.subr.mxu0 0.0
    %73 = vmatpush1.msra.mxu0 0.0
    %74 = vmatprep.subr.mxu0 0.0
    %75 = vmatpush1.msra.mxu0 0.0
    %76 = vmatprep.subr.mxu0 0.0
    %77 = vmatpush1.msra.mxu0 0.0
    %78 = vmatprep.subr.mxu0 0.0
    %79 = vmatpush1.msra.mxu0 0.0
    %80 = vmatprep.subr.mxu0 0.0
    %81 = vmatpush1.msra.mxu0 0.0
    %82 = vmatprep.subr.mxu0 0.0
    %83 = vmatpush1.msra.mxu0 0.0
    %84 = vmatprep.subr.mxu0 0.0
    %85 = vmatpush1.msra.mxu0 0.0
    %86 = vmatprep.subr.mxu0 0.0
    %87 = vmatpush1.msra.mxu0 0.0
    %88 = vmatprep.subr.mxu0 0.0
    %89 = vmatpush1.msra.mxu0 0.0
    %90 = vmatprep.subr.mxu0 0.0
    %91 = vmatpush1.msra.mxu0 0.0
    %92 = vmatprep.subr.mxu0 0.0
    %93 = vmatpush1.msra.mxu0 0.0
    %94 = vmatprep.subr.mxu0 0.0
    %95 = vmatpush1.msra.mxu0 0.0
    %96 = vmatprep.subr.mxu0 0.0
    %97 = vmatpush1.msra.mxu0 0.0
    %98 = vmatprep.subr.mxu0 0.0
    %99 = vmatpush1.msra.mxu0 0.0
    %100 = vmatprep.subr.mxu0 0.0
    %101 = vmatpush1.msra.mxu0 0.0
    %102 = vmatprep.subr.mxu0 0.0
    %103 = vmatpush1.msra.mxu0 0.0
    %104 = vmatprep.subr.mxu0 0.0
    %105 = vmatpush1.msra.mxu0 0.0
    %106 = vmatprep.subr.mxu0 0.0
    %107 = vmatpush1.msra.mxu0 0.0
    %108 = vmatprep.subr.mxu0 0.0
    %109 = vmatpush1.msra.mxu0 0.0
    %110 = vmatprep.subr.mxu0 0.0
    %111 = vmatpush1.msra.mxu0 0.0
    %112 = vmatprep.subr.mxu0 0.0
    %113 = vmatpush1.msra.mxu0 0.0
    %114 = vmatprep.subr.mxu0 0.0
    %115 = vmatpush1.msra.mxu0 0.0
    %116 = vmatprep.subr.mxu0 0.0
    %117 = vmatpush1.msra.mxu0 0.0
    %118 = vmatprep.subr.mxu0 0.0
    %119 = vmatpush1.msra.mxu0 0.0
    %120 = vmatprep.subr.mxu0 0.0
    %121 = vmatpush1.msra.mxu0 0.0
    %122 = vmatprep.subr.mxu0 0.0
    %123 = vmatpush1.msra.mxu0 0.0
    %124 = vmatprep.subr.mxu0 0.0
    %125 = vmatpush1.msra.mxu0 0.0
    %126 = vmatprep.mubr.f32.mxu0 0.0
    %127 = vmatmul.mubr.f32.gmra.mrb[0].mxu0 %v49
    %v128 = vpop.f32.mrb[0].mxu0
    %v129 = vadd.f32 0.0, %v128
    %v130 = vpop.f32.mrb[0].mxu0
    %v131 = vadd.f32 0.0, %v130
    %132 = vmatprep.mubr.f32.mxu0 0.0
    %133 = vmatmul.mubr.f32.gmra.mrb[0].mxu0 %v52
    %v134 = vpop.f32.mrb[0].mxu0
    %v135 = vadd.f32 0.0, %v134
    %v136 = vpop.f32.mrb[0].mxu0
    %v137 = vadd.f32 0.0, %v136
    %138 = vmatprep.mubr.f32.mxu0 0.0
    %139 = vmatmul.mubr.f32.gmra.mrb[0].mxu0 %v55
    %v140 = vpop.f32.mrb[0].mxu0
    %v141 = vadd.f32 0.0, %v140
    %v142 = vpop.f32.mrb[0].mxu0
    %v143 = vadd.f32 0.0, %v142
    %144 = vdwg.mxu0
    %s145 = scalar_lea.vmem %s3, 8
    %v146 = vld [vmem:[%s145] sm:$0xff]
    %v148 = vcombine.high %v146, %v146
    %v149 = vsel %vm57, %v146, 0
    %v151 = vsel %vm57, %v148, 0
    %153 = vmatprep.subr.mxu0 %v151
    %154 = vmatpush1.msra.mxu0 %v149
    %155 = vmatprep.subr.mxu0 0.0
    %156 = vmatpush1.msra.mxu0 0.0
    %157 = vmatprep.subr.mxu0 0.0
    %158 = vmatpush1.msra.mxu0 0.0
    %159 = vmatprep.subr.mxu0 0.0
    %160 = vmatpush1.msra.mxu0 0.0
    %161 = vmatprep.subr.mxu0 0.0
    %162 = vmatpush1.msra.mxu0 0.0
    %163 = vmatprep.subr.mxu0 0.0
    %164 = vmatpush1.msra.mxu0 0.0
    %165 = vmatprep.subr.mxu0 0.0
    %166 = vmatpush1.msra.mxu0 0.0
    %167 = vmatprep.subr.mxu0 0.0
    %168 = vmatpush1.msra.mxu0 0.0
    %169 = vmatprep.subr.mxu0 0.0
    %170 = vmatpush1.msra.mxu0 0.0
    %171 = vmatprep.subr.mxu0 0.0
    %172 = vmatpush1.msra.mxu0 0.0
    %173 = vmatprep.subr.mxu0 0.0
    %174 = vmatpush1.msra.mxu0 0.0
    %175 = vmatprep.subr.mxu0 0.0
    %176 = vmatpush1.msra.mxu0 0.0
    %177 = vmatprep.subr.mxu0 0.0
    %178 = vmatpush1.msra.mxu0 0.0
    %179 = vmatprep.subr.mxu0 0.0
    %180 = vmatpush1.msra.mxu0 0.0
    %181 = vmatprep.subr.mxu0 0.0
    %182 = vmatpush1.msra.mxu0 0.0
    %183 = vmatprep.subr.mxu0 0.0
    %184 = vmatpush1.msra.mxu0 0.0
    %185 = vmatprep.subr.mxu0 0.0
    %186 = vmatpush1.msra.mxu0 0.0
    %187 = vmatprep.subr.mxu0 0.0
    %188 = vmatpush1.msra.mxu0 0.0
    %189 = vmatprep.subr.mxu0 0.0
    %190 = vmatpush1.msra.mxu0 0.0
    %191 = vmatprep.subr.mxu0 0.0
    %192 = vmatpush1.msra.mxu0 0.0
    %193 = vmatprep.subr.mxu0 0.0
    %194 = vmatpush1.msra.mxu0 0.0
    %195 = vmatprep.subr.mxu0 0.0
    %196 = vmatpush1.msra.mxu0 0.0
    %197 = vmatprep.subr.mxu0 0.0
    %198 = vmatpush1.msra.mxu0 0.0
    %199 = vmatprep.subr.mxu0 0.0
    %200 = vmatpush1.msra.mxu0 0.0
    %201 = vmatprep.subr.mxu0 0.0
    %202 = vmatpush1.msra.mxu0 0.0
    %203 = vmatprep.subr.mxu0 0.0
    %204 = vmatpush1.msra.mxu0 0.0
    %205 = vmatprep.subr.mxu0 0.0
    %206 = vmatpush1.msra.mxu0 0.0
    %207 = vmatprep.subr.mxu0 0.0
    %208 = vmatpush1.msra.mxu0 0.0
    %209 = vmatprep.subr.mxu0 0.0
    %210 = vmatpush1.msra.mxu0 0.0
    %211 = vmatprep.subr.mxu0 0.0
    %212 = vmatpush1.msra.mxu0 0.0
    %213 = vmatprep.subr.mxu0 0.0
    %214 = vmatpush1.msra.mxu0 0.0
    %215 = vmatprep.subr.mxu0 0.0
    %216 = vmatpush1.msra.mxu0 0.0
    %217 = vmatprep.mubr.f32.mxu0 0.0
    %218 = vmatmul.mubr.f32.gmra.mrb[0].mxu0 %v49
    %v219 = vpop.f32.mrb[0].mxu0
    %v220 = vadd.f32 0.0, %v219
    %v221 = vpop.f32.mrb[0].mxu0
    %v222 = vadd.f32 0.0, %v221
    %223 = vmatprep.mubr.f32.mxu0 0.0
    %224 = vmatmul.mubr.f32.gmra.mrb[0].mxu0 %v52
    %v225 = vpop.f32.mrb[0].mxu0
    %v226 = vadd.f32 0.0, %v225
    %v227 = vpop.f32.mrb[0].mxu0
    %v228 = vadd.f32 0.0, %v227
    %229 = vmatprep.mubr.f32.mxu0 0.0
    %230 = vmatmul.mubr.f32.gmra.mrb[0].mxu0 %v55
    %v231 = vpop.f32.mrb[0].mxu0
    %v232 = vadd.f32 0.0, %v231
    %v233 = vpop.f32.mrb[0].mxu0
    %v234 = vadd.f32 0.0, %v233
    %235 = vdwg.mxu0
    %v236 = vld [vmem:[%s4] sm:$0x1f]
    %v237 = vld [vmem:[%s4 + $0x8] sm:$0x1f]
    %vm238 = vcmask 39936
    %v240 = vsel %vm238, %v40, 0
    %v243 = vsel %vm238, %v41, 0
    %v246 = vsel %vm238, %v42, 0
    %vm248 = vcmask 1044480
    %v250 = vsel %vm248, %v236, 0
    %v253 = vsel %vm248, %v237, 0
    %255 = vmatprep.subr.mxu0 %v253
    %256 = vmatpush1.msra.mxu0 %v250
    %257 = vmatprep.subr.mxu0 0.0
    %258 = vmatpush1.msra.mxu0 0.0
    %259 = vmatprep.subr.mxu0 0.0
    %260 = vmatpush1.msra.mxu0 0.0
    %261 = vmatprep.subr.mxu0 0.0
    %262 = vmatpush1.msra.mxu0 0.0
    %263 = vmatprep.subr.mxu0 0.0
    %264 = vmatpush1.msra.mxu0 0.0
    %265 = vmatprep.subr.mxu0 0.0
    %266 = vmatpush1.msra.mxu0 0.0
    %267 = vmatprep.subr.mxu0 0.0
    %268 = vmatpush1.msra.mxu0 0.0
    %269 = vmatprep.subr.mxu0 0.0
    %270 = vmatpush1.msra.mxu0 0.0
    %271 = vmatprep.subr.mxu0 0.0
    %272 = vmatpush1.msra.mxu0 0.0
    %273 = vmatprep.subr.mxu0 0.0
    %274 = vmatpush1.msra.mxu0 0.0
    %275 = vmatprep.subr.mxu0 0.0
    %276 = vmatpush1.msra.mxu0 0.0
    %277 = vmatprep.subr.mxu0 0.0
    %278 = vmatpush1.msra.mxu0 0.0
    %279 = vmatprep.subr.mxu0 0.0
    %280 = vmatpush1.msra.mxu0 0.0
    %281 = vmatprep.subr.mxu0 0.0
    %282 = vmatpush1.msra.mxu0 0.0
    %283 = vmatprep.subr.mxu0 0.0
    %284 = vmatpush1.msra.mxu0 0.0
    %285 = vmatprep.subr.mxu0 0.0
    %286 = vmatpush1.msra.mxu0 0.0
    %287 = vmatprep.subr.mxu0 0.0
    %288 = vmatpush1.msra.mxu0 0.0
    %289 = vmatprep.subr.mxu0 0.0
    %290 = vmatpush1.msra.mxu0 0.0
    %291 = vmatprep.subr.mxu0 0.0
    %292 = vmatpush1.msra.mxu0 0.0
    %293 = vmatprep.subr.mxu0 0.0
    %294 = vmatpush1.msra.mxu0 0.0
    %295 = vmatprep.subr.mxu0 0.0
    %296 = vmatpush1.msra.mxu0 0.0
    %297 = vmatprep.subr.mxu0 0.0
    %298 = vmatpush1.msra.mxu0 0.0
    %299 = vmatprep.subr.mxu0 0.0
    %300 = vmatpush1.msra.mxu0 0.0
    %301 = vmatprep.subr.mxu0 0.0
    %302 = vmatpush1.msra.mxu0 0.0
    %303 = vmatprep.subr.mxu0 0.0
    %304 = vmatpush1.msra.mxu0 0.0
    %305 = vmatprep.subr.mxu0 0.0
    %306 = vmatpush1.msra.mxu0 0.0
    %307 = vmatprep.subr.mxu0 0.0
    %308 = vmatpush1.msra.mxu0 0.0
    %309 = vmatprep.subr.mxu0 0.0
    %310 = vmatpush1.msra.mxu0 0.0
    %311 = vmatprep.subr.mxu0 0.0
    %312 = vmatpush1.msra.mxu0 0.0
    %313 = vmatprep.subr.mxu0 0.0
    %314 = vmatpush1.msra.mxu0 0.0
    %315 = vmatprep.subr.mxu0 0.0
    %316 = vmatpush1.msra.mxu0 0.0
    %317 = vmatprep.subr.mxu0 0.0
    %318 = vmatpush1.msra.mxu0 0.0
    %319 = vmatprep.mubr.f32.mxu0 0.0
    %320 = vmatmul.mubr.f32.gmra.mrb[0].mxu0 %v240
    %v321 = vpop.f32.mrb[0].mxu0
    %v322 = vadd.f32 0.0, %v321
    %v323 = vpop.f32.mrb[0].mxu0
    %v324 = vadd.f32 0.0, %v323
    %325 = vmatprep.mubr.f32.mxu0 0.0
    %326 = vmatmul.mubr.f32.gmra.mrb[0].mxu0 %v243
    %v327 = vpop.f32.mrb[0].mxu0
    %v328 = vadd.f32 0.0, %v327
    %v329 = vpop.f32.mrb[0].mxu0
    %v330 = vadd.f32 0.0, %v329
    %331 = vmatprep.mubr.f32.mxu0 0.0
    %332 = vmatmul.mubr.f32.gmra.mrb[0].mxu0 %v246
    %v333 = vpop.f32.mrb[0].mxu0
    %v334 = vadd.f32 0.0, %v333
    %v335 = vpop.f32.mrb[0].mxu0
    %v336 = vadd.f32 0.0, %v335
    %337 = vdwg.mxu0
    %s338 = scalar_lea.vmem %s4, 16
    %v339 = vld [vmem:[%s338] sm:$0x1f]
    %v340 = vld [vmem:[%s338 + $0x8] sm:$0x1f]
    %v342 = vsel %vm248, %v339, 0
    %v345 = vsel %vm248, %v340, 0
    %347 = vmatprep.subr.mxu0 %v345
    %348 = vmatpush1.msra.mxu0 %v342
    %349 = vmatprep.subr.mxu0 0.0
    %350 = vmatpush1.msra.mxu0 0.0
    %351 = vmatprep.subr.mxu0 0.0
    %352 = vmatpush1.msra.mxu0 0.0
    %353 = vmatprep.subr.mxu0 0.0
    %354 = vmatpush1.msra.mxu0 0.0
    %355 = vmatprep.subr.mxu0 0.0
    %356 = vmatpush1.msra.mxu0 0.0
    %357 = vmatprep.subr.mxu0 0.0
    %358 = vmatpush1.msra.mxu0 0.0
    %359 = vmatprep.subr.mxu0 0.0
    %360 = vmatpush1.msra.mxu0 0.0
    %361 = vmatprep.subr.mxu0 0.0
    %362 = vmatpush1.msra.mxu0 0.0
    %363 = vmatprep.subr.mxu0 0.0
    %364 = vmatpush1.msra.mxu0 0.0
    %365 = vmatprep.subr.mxu0 0.0
    %366 = vmatpush1.msra.mxu0 0.0
    %367 = vmatprep.subr.mxu0 0.0
    %368 = vmatpush1.msra.mxu0 0.0
    %369 = vmatprep.subr.mxu0 0.0
    %370 = vmatpush1.msra.mxu0 0.0
    %371 = vmatprep.subr.mxu0 0.0
    %372 = vmatpush1.msra.mxu0 0.0
    %373 = vmatprep.subr.mxu0 0.0
    %374 = vmatpush1.msra.mxu0 0.0
    %375 = vmatprep.subr.mxu0 0.0
    %376 = vmatpush1.msra.mxu0 0.0
    %377 = vmatprep.subr.mxu0 0.0
    %378 = vmatpush1.msra.mxu0 0.0
    %379 = vmatprep.subr.mxu0 0.0
    %380 = vmatpush1.msra.mxu0 0.0
    %381 = vmatprep.subr.mxu0 0.0
    %382 = vmatpush1.msra.mxu0 0.0
    %383 = vmatprep.subr.mxu0 0.0
    %384 = vmatpush1.msra.mxu0 0.0
    %385 = vmatprep.subr.mxu0 0.0
    %386 = vmatpush1.msra.mxu0 0.0
    %387 = vmatprep.subr.mxu0 0.0
    %388 = vmatpush1.msra.mxu0 0.0
    %389 = vmatprep.subr.mxu0 0.0
    %390 = vmatpush1.msra.mxu0 0.0
    %391 = vmatprep.subr.mxu0 0.0
    %392 = vmatpush1.msra.mxu0 0.0
    %393 = vmatprep.subr.mxu0 0.0
    %394 = vmatpush1.msra.mxu0 0.0
    %395 = vmatprep.subr.mxu0 0.0
    %396 = vmatpush1.msra.mxu0 0.0
    %397 = vmatprep.subr.mxu0 0.0
    %398 = vmatpush1.msra.mxu0 0.0
    %399 = vmatprep.subr.mxu0 0.0
    %400 = vmatpush1.msra.mxu0 0.0
    %401 = vmatprep.subr.mxu0 0.0
    %402 = vmatpush1.msra.mxu0 0.0
    %403 = vmatprep.subr.mxu0 0.0
    %404 = vmatpush1.msra.mxu0 0.0
    %405 = vmatprep.subr.mxu0 0.0
    %406 = vmatpush1.msra.mxu0 0.0
    %407 = vmatprep.subr.mxu0 0.0
    %408 = vmatpush1.msra.mxu0 0.0
    %409 = vmatprep.subr.mxu0 0.0
    %410 = vmatpush1.msra.mxu0 0.0
    %411 = vmatprep.mubr.f32.mxu0 0.0
    %412 = vmatmul.mubr.f32.gmra.mrb[0].mxu0 %v240
    %v413 = vpop.f32.mrb[0].mxu0
    %v414 = vadd.f32 0.0, %v413
    %v415 = vpop.f32.mrb[0].mxu0
    %v416 = vadd.f32 0.0, %v415
    %417 = vmatprep.mubr.f32.mxu0 0.0
    %418 = vmatmul.mubr.f32.gmra.mrb[0].mxu0 %v243
    %v419 = vpop.f32.mrb[0].mxu0
    %v420 = vadd.f32 0.0, %v419
    %v421 = vpop.f32.mrb[0].mxu0
    %v422 = vadd.f32 0.0, %v421
    %423 = vmatprep.mubr.f32.mxu0 0.0
    %424 = vmatmul.mubr.f32.gmra.mrb[0].mxu0 %v246
    %v425 = vpop.f32.mrb[0].mxu0
    %v426 = vadd.f32 0.0, %v425
    %v427 = vpop.f32.mrb[0].mxu0
    %v428 = vadd.f32 0.0, %v427
    %429 = vdwg.mxu0
    %v430 = vmul.f32 %v129, %v322
    %v431 = vmul.f32 %v131, %v324
    %v432 = vmul.f32 %v135, %v328
    %v433 = vmul.f32 %v137, %v330
    %v434 = vmul.f32 %v141, %v334
    %v435 = vmul.f32 %v143, %v336
    %v436 = vmul.f32 %v220, %v414
    %v437 = vmul.f32 %v222, %v416
    %v438 = vmul.f32 %v226, %v420
    %v439 = vmul.f32 %v228, %v422
    %v440 = vmul.f32 %v232, %v426
    %v441 = vmul.f32 %v234, %v428
    %v442 = vsub.f32 %v430, %v436
    %v443 = vsub.f32 %v431, %v437
    %v444 = vsub.f32 %v432, %v438
    %v445 = vsub.f32 %v433, %v439
    %v446 = vsub.f32 %v434, %v440
    %v447 = vsub.f32 %v435, %v441
    %v448 = vmul.f32 %v129, %v414
    %v449 = vmul.f32 %v131, %v416
    %v450 = vmul.f32 %v135, %v420
    %v451 = vmul.f32 %v137, %v422
    %v452 = vmul.f32 %v141, %v426
    %v453 = vmul.f32 %v143, %v428
    %v454 = vmul.f32 %v220, %v322
    %v455 = vmul.f32 %v222, %v324
    %v456 = vmul.f32 %v226, %v328
    %v457 = vmul.f32 %v228, %v330
    %v458 = vmul.f32 %v232, %v334
    %v459 = vmul.f32 %v234, %v336
    %v460 = vadd.f32 %v448, %v454
    %v461 = vadd.f32 %v449, %v455
    %v462 = vadd.f32 %v450, %v456
    %v463 = vadd.f32 %v451, %v457
    %v464 = vadd.f32 %v452, %v458
    %v465 = vadd.f32 %v453, %v459
    %v466 = vld [vmem:[%s5] sm:$0xff]
    %v467 = vld [vmem:[%s5 + $0x8] sm:$0xff]
    %v470 = vcombine.high %v466, %v466
    %v472 = vunpack.c.l.s4 1966171168
    %v473 = vunpack.c.0.s8 %v472
    %v474 = vlaneseq
    %v475 = vshrl.u32 %v474, 7
    %v476 = vsub.s32 %v473, %v475
    %v477 = vrot.slane %v466, %v476
    %v479 = vunpack.c.l.s4 1966171168
    %v480 = vunpack.c.0.s8 %v479
    %v481 = vlaneseq
    %v482 = vshrl.u32 %v481, 7
    %v483 = vsub.s32 %v480, %v482
    %v484 = vrot.slane %v470, %v483
    %v485 = vcombine.high %v477, %v477
    %v486 = vcombine.high %v484, %v484
    %v488 = vunpack.c.l.s4 1966171168
    %v489 = vunpack.c.0.s8 %v488
    %v490 = vlaneseq
    %v491 = vshrl.u32 %v490, 7
    %v492 = vsub.s32 %v489, %v491
    %v493 = vrot.slane %v477, %v492
    %v495 = vunpack.c.l.s4 1966171168
    %v496 = vunpack.c.0.s8 %v495
    %v497 = vlaneseq
    %v498 = vshrl.u32 %v497, 7
    %v499 = vsub.s32 %v496, %v498
    %v500 = vrot.slane %v484, %v499
    %v502 = vunpack.c.l.s4 1966171168
    %v503 = vunpack.c.0.s8 %v502
    %v504 = vlaneseq
    %v505 = vshrl.u32 %v504, 7
    %v506 = vsub.s32 %v503, %v505
    %v507 = vrot.slane %v485, %v506
    %v509 = vunpack.c.l.s4 1966171168
    %v510 = vunpack.c.0.s8 %v509
    %v511 = vlaneseq
    %v512 = vshrl.u32 %v511, 7
    %v513 = vsub.s32 %v510, %v512
    %v514 = vrot.slane %v486, %v513
    %v515 = vcombine.high %v493, %v493
    %v516 = vcombine.high %v500, %v500
    %v517 = vcombine.high %v507, %v507
    %v518 = vcombine.high %v514, %v514
    %v519 = vcombine.high %v467, %v467
    %v521 = vunpack.c.l.s4 1966171168
    %v522 = vunpack.c.0.s8 %v521
    %v523 = vlaneseq
    %v524 = vshrl.u32 %v523, 7
    %v525 = vsub.s32 %v522, %v524
    %v526 = vrot.slane %v467, %v525
    %v528 = vunpack.c.l.s4 1966171168
    %v529 = vunpack.c.0.s8 %v528
    %v530 = vlaneseq
    %v531 = vshrl.u32 %v530, 7
    %v532 = vsub.s32 %v529, %v531
    %v533 = vrot.slane %v519, %v532
    %v534 = vcombine.high %v526, %v526
    %v535 = vcombine.high %v533, %v533
    %v537 = vunpack.c.l.s4 1966171168
    %v538 = vunpack.c.0.s8 %v537
    %v539 = vlaneseq
    %v540 = vshrl.u32 %v539, 7
    %v541 = vsub.s32 %v538, %v540
    %v542 = vrot.slane %v526, %v541
    %v544 = vunpack.c.l.s4 1966171168
    %v545 = vunpack.c.0.s8 %v544
    %v546 = vlaneseq
    %v547 = vshrl.u32 %v546, 7
    %v548 = vsub.s32 %v545, %v547
    %v549 = vrot.slane %v533, %v548
    %v551 = vunpack.c.l.s4 1966171168
    %v552 = vunpack.c.0.s8 %v551
    %v553 = vlaneseq
    %v554 = vshrl.u32 %v553, 7
    %v555 = vsub.s32 %v552, %v554
    %v556 = vrot.slane %v534, %v555
    %v558 = vunpack.c.l.s4 1966171168
    %v559 = vunpack.c.0.s8 %v558
    %v560 = vlaneseq
    %v561 = vshrl.u32 %v560, 7
    %v562 = vsub.s32 %v559, %v561
    %v563 = vrot.slane %v535, %v562
    %v564 = vcombine.high %v542, %v542
    %v565 = vcombine.high %v549, %v549
    %v566 = vcombine.high %v556, %v556
    %v567 = vcombine.high %v563, %v563
    %s568 = scalar_lea.vmem %s5, 16
    %v569 = vld [vmem:[%s568] sm:$0xff]
    %v570 = vld [vmem:[%s568 + $0x8] sm:$0xff]
    %v573 = vcombine.high %v569, %v569
    %v575 = vunpack.c.l.s4 1966171168
    %v576 = vunpack.c.0.s8 %v575
    %v577 = vlaneseq
    %v578 = vshrl.u32 %v577, 7
    %v579 = vsub.s32 %v576, %v578
    %v580 = vrot.slane %v569, %v579
    %v582 = vunpack.c.l.s4 1966171168
    %v583 = vunpack.c.0.s8 %v582
    %v584 = vlaneseq
    %v585 = vshrl.u32 %v584, 7
    %v586 = vsub.s32 %v583, %v585
    %v587 = vrot.slane %v573, %v586
    %v588 = vcombine.high %v580, %v580
    %v589 = vcombine.high %v587, %v587
    %v591 = vunpack.c.l.s4 1966171168
    %v592 = vunpack.c.0.s8 %v591
    %v593 = vlaneseq
    %v594 = vshrl.u32 %v593, 7
    %v595 = vsub.s32 %v592, %v594
    %v596 = vrot.slane %v580, %v595
    %v598 = vunpack.c.l.s4 1966171168
    %v599 = vunpack.c.0.s8 %v598
    %v600 = vlaneseq
    %v601 = vshrl.u32 %v600, 7
    %v602 = vsub.s32 %v599, %v601
    %v603 = vrot.slane %v587, %v602
    %v605 = vunpack.c.l.s4 1966171168
    %v606 = vunpack.c.0.s8 %v605
    %v607 = vlaneseq
    %v608 = vshrl.u32 %v607, 7
    %v609 = vsub.s32 %v606, %v608
    %v610 = vrot.slane %v588, %v609
    %v612 = vunpack.c.l.s4 1966171168
    %v613 = vunpack.c.0.s8 %v612
    %v614 = vlaneseq
    %v615 = vshrl.u32 %v614, 7
    %v616 = vsub.s32 %v613, %v615
    %v617 = vrot.slane %v589, %v616
    %v618 = vcombine.high %v596, %v596
    %v619 = vcombine.high %v603, %v603
    %v620 = vcombine.high %v610, %v610
    %v621 = vcombine.high %v617, %v617
    %v622 = vcombine.high %v570, %v570
    %v624 = vunpack.c.l.s4 1966171168
    %v625 = vunpack.c.0.s8 %v624
    %v626 = vlaneseq
    %v627 = vshrl.u32 %v626, 7
    %v628 = vsub.s32 %v625, %v627
    %v629 = vrot.slane %v570, %v628
    %v631 = vunpack.c.l.s4 1966171168
    %v632 = vunpack.c.0.s8 %v631
    %v633 = vlaneseq
    %v634 = vshrl.u32 %v633, 7
    %v635 = vsub.s32 %v632, %v634
    %v636 = vrot.slane %v622, %v635
    %v637 = vcombine.high %v629, %v629
    %v638 = vcombine.high %v636, %v636
    %v640 = vunpack.c.l.s4 1966171168
    %v641 = vunpack.c.0.s8 %v640
    %v642 = vlaneseq
    %v643 = vshrl.u32 %v642, 7
    %v644 = vsub.s32 %v641, %v643
    %v645 = vrot.slane %v629, %v644
    %v647 = vunpack.c.l.s4 1966171168
    %v648 = vunpack.c.0.s8 %v647
    %v649 = vlaneseq
    %v650 = vshrl.u32 %v649, 7
    %v651 = vsub.s32 %v648, %v650
    %v652 = vrot.slane %v636, %v651
    %v654 = vunpack.c.l.s4 1966171168
    %v655 = vunpack.c.0.s8 %v654
    %v656 = vlaneseq
    %v657 = vshrl.u32 %v656, 7
    %v658 = vsub.s32 %v655, %v657
    %v659 = vrot.slane %v637, %v658
    %v661 = vunpack.c.l.s4 1966171168
    %v662 = vunpack.c.0.s8 %v661
    %v663 = vlaneseq
    %v664 = vshrl.u32 %v663, 7
    %v665 = vsub.s32 %v662, %v664
    %v666 = vrot.slane %v638, %v665
    %v667 = vcombine.high %v645, %v645
    %v668 = vcombine.high %v652, %v652
    %v669 = vcombine.high %v659, %v659
    %v670 = vcombine.high %v666, %v666
    %v671 = vld [vmem:[%s6] sm:$0xff]
    %v672 = vld [vmem:[%s6 + $0x8] sm:$0xff]
    %s673 = scalar_lea.vmem %s6, 16
    %v674 = vld [vmem:[%s673] sm:$0xff]
    %v675 = vld [vmem:[%s673 + $0x8] sm:$0xff]
    %v676 = vlaneseq
    %v677 = vshrl.u32 %v676, 7
    %v678 = vsub.s32 0, %v677
    %v679 = vrot.slane %v493, %v678
    %v680 = vlaneseq
    %v681 = vshrl.u32 %v680, 7
    %v682 = vsub.s32 0, %v681
    %v683 = vrot.slane %v507, %v682
    %v684 = vlaneseq
    %v685 = vshrl.u32 %v684, 7
    %v686 = vsub.s32 0, %v685
    %v687 = vrot.slane %v515, %v686
    %v688 = vlaneseq
    %v689 = vshrl.u32 %v688, 7
    %v690 = vsub.s32 0, %v689
    %v691 = vrot.slane %v517, %v690
    %v692 = vlaneseq
    %v693 = vshrl.u32 %v692, 7
    %v694 = vsub.s32 0, %v693
    %v695 = vrot.slane %v500, %v694
    %v696 = vlaneseq
    %v697 = vshrl.u32 %v696, 7
    %v698 = vsub.s32 0, %v697
    %v699 = vrot.slane %v514, %v698
    %v700 = vlaneseq
    %v701 = vshrl.u32 %v700, 7
    %v702 = vsub.s32 0, %v701
    %v703 = vrot.slane %v516, %v702
    %v704 = vlaneseq
    %v705 = vshrl.u32 %v704, 7
    %v706 = vsub.s32 0, %v705
    %v707 = vrot.slane %v518, %v706
    %v708 = vlaneseq
    %v709 = vshrl.u32 %v708, 7
    %v710 = vsub.s32 0, %v709
    %v711 = vrot.slane %v542, %v710
    %v712 = vlaneseq
    %v713 = vshrl.u32 %v712, 7
    %v714 = vsub.s32 0, %v713
    %v715 = vrot.slane %v556, %v714
    %v716 = vlaneseq
    %v717 = vshrl.u32 %v716, 7
    %v718 = vsub.s32 0, %v717
    %v719 = vrot.slane %v564, %v718
    %v720 = vlaneseq
    %v721 = vshrl.u32 %v720, 7
    %v722 = vsub.s32 0, %v721
    %v723 = vrot.slane %v566, %v722
    %v724 = vlaneseq
    %v725 = vshrl.u32 %v724, 7
    %v726 = vsub.s32 0, %v725
    %v727 = vrot.slane %v549, %v726
    %v728 = vlaneseq
    %v729 = vshrl.u32 %v728, 7
    %v730 = vsub.s32 0, %v729
    %v731 = vrot.slane %v563, %v730
    %v732 = vlaneseq
    %v733 = vshrl.u32 %v732, 7
    %v734 = vsub.s32 0, %v733
    %v735 = vrot.slane %v565, %v734
    %v736 = vlaneseq
    %v737 = vshrl.u32 %v736, 7
    %v738 = vsub.s32 0, %v737
    %v739 = vrot.slane %v567, %v738
    %v756 = vmul.f32 %v679, %v671
    %v757 = vmul.f32 %v679, %v672
    %v758 = vmul.f32 %v683, %v671
    %v759 = vmul.f32 %v683, %v672
    %v760 = vmul.f32 %v687, %v671
    %v761 = vmul.f32 %v687, %v672
    %v762 = vmul.f32 %v691, %v671
    %v763 = vmul.f32 %v691, %v672
    %v764 = vmul.f32 %v695, %v671
    %v765 = vmul.f32 %v695, %v672
    %v766 = vmul.f32 %v699, %v671
    %v767 = vmul.f32 %v699, %v672
    %v768 = vmul.f32 %v703, %v671
    %v769 = vmul.f32 %v703, %v672
    %v770 = vmul.f32 %v707, %v671
    %v771 = vmul.f32 %v707, %v672
    %v772 = vmul.f32 %v711, %v671
    %v773 = vmul.f32 %v711, %v672
    %v774 = vmul.f32 %v715, %v671
    %v775 = vmul.f32 %v715, %v672
    %v776 = vmul.f32 %v719, %v671
    %v777 = vmul.f32 %v719, %v672
    %v778 = vmul.f32 %v723, %v671
    %v779 = vmul.f32 %v723, %v672
    %v780 = vmul.f32 %v727, %v671
    %v781 = vmul.f32 %v727, %v672
    %v782 = vmul.f32 %v731, %v671
    %v783 = vmul.f32 %v731, %v672
    %v784 = vmul.f32 %v735, %v671
    %v785 = vmul.f32 %v735, %v672
    %v786 = vmul.f32 %v739, %v671
    %v787 = vmul.f32 %v739, %v672
    %v788 = vlaneseq
    %v789 = vshrl.u32 %v788, 7
    %v790 = vsub.s32 0, %v789
    %v791 = vrot.slane %v596, %v790
    %v792 = vlaneseq
    %v793 = vshrl.u32 %v792, 7
    %v794 = vsub.s32 0, %v793
    %v795 = vrot.slane %v610, %v794
    %v796 = vlaneseq
    %v797 = vshrl.u32 %v796, 7
    %v798 = vsub.s32 0, %v797
    %v799 = vrot.slane %v618, %v798
    %v800 = vlaneseq
    %v801 = vshrl.u32 %v800, 7
    %v802 = vsub.s32 0, %v801
    %v803 = vrot.slane %v620, %v802
    %v804 = vlaneseq
    %v805 = vshrl.u32 %v804, 7
    %v806 = vsub.s32 0, %v805
    %v807 = vrot.slane %v603, %v806
    %v808 = vlaneseq
    %v809 = vshrl.u32 %v808, 7
    %v810 = vsub.s32 0, %v809
    %v811 = vrot.slane %v617, %v810
    %v812 = vlaneseq
    %v813 = vshrl.u32 %v812, 7
    %v814 = vsub.s32 0, %v813
    %v815 = vrot.slane %v619, %v814
    %v816 = vlaneseq
    %v817 = vshrl.u32 %v816, 7
    %v818 = vsub.s32 0, %v817
    %v819 = vrot.slane %v621, %v818
    %v820 = vlaneseq
    %v821 = vshrl.u32 %v820, 7
    %v822 = vsub.s32 0, %v821
    %v823 = vrot.slane %v645, %v822
    %v824 = vlaneseq
    %v825 = vshrl.u32 %v824, 7
    %v826 = vsub.s32 0, %v825
    %v827 = vrot.slane %v659, %v826
    %v828 = vlaneseq
    %v829 = vshrl.u32 %v828, 7
    %v830 = vsub.s32 0, %v829
    %v831 = vrot.slane %v667, %v830
    %v832 = vlaneseq
    %v833 = vshrl.u32 %v832, 7
    %v834 = vsub.s32 0, %v833
    %v835 = vrot.slane %v669, %v834
    %v836 = vlaneseq
    %v837 = vshrl.u32 %v836, 7
    %v838 = vsub.s32 0, %v837
    %v839 = vrot.slane %v652, %v838
    %v840 = vlaneseq
    %v841 = vshrl.u32 %v840, 7
    %v842 = vsub.s32 0, %v841
    %v843 = vrot.slane %v666, %v842
    %v844 = vlaneseq
    %v845 = vshrl.u32 %v844, 7
    %v846 = vsub.s32 0, %v845
    %v847 = vrot.slane %v668, %v846
    %v848 = vlaneseq
    %v849 = vshrl.u32 %v848, 7
    %v850 = vsub.s32 0, %v849
    %v851 = vrot.slane %v670, %v850
    %v868 = vmul.f32 %v791, %v674
    %v869 = vmul.f32 %v791, %v675
    %v870 = vmul.f32 %v795, %v674
    %v871 = vmul.f32 %v795, %v675
    %v872 = vmul.f32 %v799, %v674
    %v873 = vmul.f32 %v799, %v675
    %v874 = vmul.f32 %v803, %v674
    %v875 = vmul.f32 %v803, %v675
    %v876 = vmul.f32 %v807, %v674
    %v877 = vmul.f32 %v807, %v675
    %v878 = vmul.f32 %v811, %v674
    %v879 = vmul.f32 %v811, %v675
    %v880 = vmul.f32 %v815, %v674
    %v881 = vmul.f32 %v815, %v675
    %v882 = vmul.f32 %v819, %v674
    %v883 = vmul.f32 %v819, %v675
    %v884 = vmul.f32 %v823, %v674
    %v885 = vmul.f32 %v823, %v675
    %v886 = vmul.f32 %v827, %v674
    %v887 = vmul.f32 %v827, %v675
    %v888 = vmul.f32 %v831, %v674
    %v889 = vmul.f32 %v831, %v675
    %v890 = vmul.f32 %v835, %v674
    %v891 = vmul.f32 %v835, %v675
    %v892 = vmul.f32 %v839, %v674
    %v893 = vmul.f32 %v839, %v675
    %v894 = vmul.f32 %v843, %v674
    %v895 = vmul.f32 %v843, %v675
    %v896 = vmul.f32 %v847, %v674
    %v897 = vmul.f32 %v847, %v675
    %v898 = vmul.f32 %v851, %v674
    %v899 = vmul.f32 %v851, %v675
    %v900 = vsub.f32 %v756, %v868
    %v901 = vsub.f32 %v757, %v869
    %v902 = vsub.f32 %v758, %v870
    %v903 = vsub.f32 %v759, %v871
    %v904 = vsub.f32 %v760, %v872
    %v905 = vsub.f32 %v761, %v873
    %v906 = vsub.f32 %v762, %v874
    %v907 = vsub.f32 %v763, %v875
    %v908 = vsub.f32 %v764, %v876
    %v909 = vsub.f32 %v765, %v877
    %v910 = vsub.f32 %v766, %v878
    %v911 = vsub.f32 %v767, %v879
    %v912 = vsub.f32 %v768, %v880
    %v913 = vsub.f32 %v769, %v881
    %v914 = vsub.f32 %v770, %v882
    %v915 = vsub.f32 %v771, %v883
    %v916 = vsub.f32 %v772, %v884
    %v917 = vsub.f32 %v773, %v885
    %v918 = vsub.f32 %v774, %v886
    %v919 = vsub.f32 %v775, %v887
    %v920 = vsub.f32 %v776, %v888
    %v921 = vsub.f32 %v777, %v889
    %v922 = vsub.f32 %v778, %v890
    %v923 = vsub.f32 %v779, %v891
    %v924 = vsub.f32 %v780, %v892
    %v925 = vsub.f32 %v781, %v893
    %v926 = vsub.f32 %v782, %v894
    %v927 = vsub.f32 %v783, %v895
    %v928 = vsub.f32 %v784, %v896
    %v929 = vsub.f32 %v785, %v897
    %v930 = vsub.f32 %v786, %v898
    %v931 = vsub.f32 %v787, %v899
    %v932 = vmul.f32 %v679, %v674
    %v933 = vmul.f32 %v679, %v675
    %v934 = vmul.f32 %v683, %v674
    %v935 = vmul.f32 %v683, %v675
    %v936 = vmul.f32 %v687, %v674
    %v937 = vmul.f32 %v687, %v675
    %v938 = vmul.f32 %v691, %v674
    %v939 = vmul.f32 %v691, %v675
    %v940 = vmul.f32 %v695, %v674
    %v941 = vmul.f32 %v695, %v675
    %v942 = vmul.f32 %v699, %v674
    %v943 = vmul.f32 %v699, %v675
    %v944 = vmul.f32 %v703, %v674
    %v945 = vmul.f32 %v703, %v675
    %v946 = vmul.f32 %v707, %v674
    %v947 = vmul.f32 %v707, %v675
    %v948 = vmul.f32 %v711, %v674
    %v949 = vmul.f32 %v711, %v675
    %v950 = vmul.f32 %v715, %v674
    %v951 = vmul.f32 %v715, %v675
    %v952 = vmul.f32 %v719, %v674
    %v953 = vmul.f32 %v719, %v675
    %v954 = vmul.f32 %v723, %v674
    %v955 = vmul.f32 %v723, %v675
    %v956 = vmul.f32 %v727, %v674
    %v957 = vmul.f32 %v727, %v675
    %v958 = vmul.f32 %v731, %v674
    %v959 = vmul.f32 %v731, %v675
    %v960 = vmul.f32 %v735, %v674
    %v961 = vmul.f32 %v735, %v675
    %v962 = vmul.f32 %v739, %v674
    %v963 = vmul.f32 %v739, %v675
    %v964 = vmul.f32 %v791, %v671
    %v965 = vmul.f32 %v791, %v672
    %v966 = vmul.f32 %v795, %v671
    %v967 = vmul.f32 %v795, %v672
    %v968 = vmul.f32 %v799, %v671
    %v969 = vmul.f32 %v799, %v672
    %v970 = vmul.f32 %v803, %v671
    %v971 = vmul.f32 %v803, %v672
    %v972 = vmul.f32 %v807, %v671
    %v973 = vmul.f32 %v807, %v672
    %v974 = vmul.f32 %v811, %v671
    %v975 = vmul.f32 %v811, %v672
    %v976 = vmul.f32 %v815, %v671
    %v977 = vmul.f32 %v815, %v672
    %v978 = vmul.f32 %v819, %v671
    %v979 = vmul.f32 %v819, %v672
    %v980 = vmul.f32 %v823, %v671
    %v981 = vmul.f32 %v823, %v672
    %v982 = vmul.f32 %v827, %v671
    %v983 = vmul.f32 %v827, %v672
    %v984 = vmul.f32 %v831, %v671
    %v985 = vmul.f32 %v831, %v672
    %v986 = vmul.f32 %v835, %v671
    %v987 = vmul.f32 %v835, %v672
    %v988 = vmul.f32 %v839, %v671
    %v989 = vmul.f32 %v839, %v672
    %v990 = vmul.f32 %v843, %v671
    %v991 = vmul.f32 %v843, %v672
    %v992 = vmul.f32 %v847, %v671
    %v993 = vmul.f32 %v847, %v672
    %v994 = vmul.f32 %v851, %v671
    %v995 = vmul.f32 %v851, %v672
    %v996 = vadd.f32 %v932, %v964
    %v997 = vadd.f32 %v933, %v965
    %v998 = vadd.f32 %v934, %v966
    %v999 = vadd.f32 %v935, %v967
    %v1000 = vadd.f32 %v936, %v968
    %v1001 = vadd.f32 %v937, %v969
    %v1002 = vadd.f32 %v938, %v970
    %v1003 = vadd.f32 %v939, %v971
    %v1004 = vadd.f32 %v940, %v972
    %v1005 = vadd.f32 %v941, %v973
    %v1006 = vadd.f32 %v942, %v974
    %v1007 = vadd.f32 %v943, %v975
    %v1008 = vadd.f32 %v944, %v976
    %v1009 = vadd.f32 %v945, %v977
    %v1010 = vadd.f32 %v946, %v978
    %v1011 = vadd.f32 %v947, %v979
    %v1012 = vadd.f32 %v948, %v980
    %v1013 = vadd.f32 %v949, %v981
    %v1014 = vadd.f32 %v950, %v982
    %v1015 = vadd.f32 %v951, %v983
    %v1016 = vadd.f32 %v952, %v984
    %v1017 = vadd.f32 %v953, %v985
    %v1018 = vadd.f32 %v954, %v986
    %v1019 = vadd.f32 %v955, %v987
    %v1020 = vadd.f32 %v956, %v988
    %v1021 = vadd.f32 %v957, %v989
    %v1022 = vadd.f32 %v958, %v990
    %v1023 = vadd.f32 %v959, %v991
    %v1024 = vadd.f32 %v960, %v992
    %v1025 = vadd.f32 %v961, %v993
    %v1026 = vadd.f32 %v962, %v994
    %v1027 = vadd.f32 %v963, %v995
    %v1028 = vpack.c.bf16 %v444, %v442
    %v1029 = vpack.c.bf16 %v445, %v443
    %v1030 = vpack.c.bf16 %v446, %v446
    %v1031 = vpack.c.bf16 %v447, %v447
    %v1032 = vpack.c.bf16 %v462, %v460
    %v1033 = vpack.c.bf16 %v463, %v461
    %v1034 = vpack.c.bf16 %v464, %v464
    %v1035 = vpack.c.bf16 %v465, %v465
    %v1036 = vadd.f32 %v442, %v460
    %v1037 = vadd.f32 %v443, %v461
    %v1038 = vadd.f32 %v444, %v462
    %v1039 = vadd.f32 %v445, %v463
    %v1040 = vadd.f32 %v446, %v464
    %v1041 = vadd.f32 %v447, %v465
    %v1042 = vpack.c.bf16 %v1038, %v1036
    %v1043 = vpack.c.bf16 %v1039, %v1037
    %v1044 = vpack.c.bf16 %v1040, %v1040
    %v1045 = vpack.c.bf16 %v1041, %v1041
    %v1046 = vpack.c.bf16 %v901, %v900
    %v1047 = vpack.c.bf16 %v903, %v902
    %v1048 = vpack.c.bf16 %v905, %v904
    %v1049 = vpack.c.bf16 %v907, %v906
    %v1050 = vpack.c.bf16 %v909, %v908
    %v1051 = vpack.c.bf16 %v911, %v910
    %v1052 = vpack.c.bf16 %v913, %v912
    %v1053 = vpack.c.bf16 %v915, %v914
    %v1054 = vpack.c.bf16 %v917, %v916
    %v1055 = vpack.c.bf16 %v919, %v918
    %v1056 = vpack.c.bf16 %v921, %v920
    %v1057 = vpack.c.bf16 %v923, %v922
    %v1058 = vpack.c.bf16 %v925, %v924
    %v1059 = vpack.c.bf16 %v927, %v926
    %v1060 = vpack.c.bf16 %v929, %v928
    %v1061 = vpack.c.bf16 %v931, %v930
    %v1062 = vpack.c.bf16 %v997, %v996
    %v1063 = vpack.c.bf16 %v999, %v998
    %v1064 = vpack.c.bf16 %v1001, %v1000
    %v1065 = vpack.c.bf16 %v1003, %v1002
    %v1066 = vpack.c.bf16 %v1005, %v1004
    %v1067 = vpack.c.bf16 %v1007, %v1006
    %v1068 = vpack.c.bf16 %v1009, %v1008
    %v1069 = vpack.c.bf16 %v1011, %v1010
    %v1070 = vpack.c.bf16 %v1013, %v1012
    %v1071 = vpack.c.bf16 %v1015, %v1014
    %v1072 = vpack.c.bf16 %v1017, %v1016
    %v1073 = vpack.c.bf16 %v1019, %v1018
    %v1074 = vpack.c.bf16 %v1021, %v1020
    %v1075 = vpack.c.bf16 %v1023, %v1022
    %v1076 = vpack.c.bf16 %v1025, %v1024
    %v1077 = vpack.c.bf16 %v1027, %v1026
    %v1078 = vadd.f32 %v900, %v996
    %v1079 = vadd.f32 %v901, %v997
    %v1080 = vadd.f32 %v902, %v998
    %v1081 = vadd.f32 %v903, %v999
    %v1082 = vadd.f32 %v904, %v1000
    %v1083 = vadd.f32 %v905, %v1001
    %v1084 = vadd.f32 %v906, %v1002
    %v1085 = vadd.f32 %v907, %v1003
    %v1086 = vadd.f32 %v908, %v1004
    %v1087 = vadd.f32 %v909, %v1005
    %v1088 = vadd.f32 %v910, %v1006
    %v1089 = vadd.f32 %v911, %v1007
    %v1090 = vadd.f32 %v912, %v1008
    %v1091 = vadd.f32 %v913, %v1009
    %v1092 = vadd.f32 %v914, %v1010
    %v1093 = vadd.f32 %v915, %v1011
    %v1094 = vadd.f32 %v916, %v1012
    %v1095 = vadd.f32 %v917, %v1013
    %v1096 = vadd.f32 %v918, %v1014
    %v1097 = vadd.f32 %v919, %v1015
    %v1098 = vadd.f32 %v920, %v1016
    %v1099 = vadd.f32 %v921, %v1017
    %v1100 = vadd.f32 %v922, %v1018
    %v1101 = vadd.f32 %v923, %v1019
    %v1102 = vadd.f32 %v924, %v1020
    %v1103 = vadd.f32 %v925, %v1021
    %v1104 = vadd.f32 %v926, %v1022
    %v1105 = vadd.f32 %v927, %v1023
    %v1106 = vadd.f32 %v928, %v1024
    %v1107 = vadd.f32 %v929, %v1025
    %v1108 = vadd.f32 %v930, %v1026
    %v1109 = vadd.f32 %v931, %v1027
    %v1110 = vpack.c.bf16 %v1079, %v1078
    %v1111 = vpack.c.bf16 %v1081, %v1080
    %v1112 = vpack.c.bf16 %v1083, %v1082
    %v1113 = vpack.c.bf16 %v1085, %v1084
    %v1114 = vpack.c.bf16 %v1087, %v1086
    %v1115 = vpack.c.bf16 %v1089, %v1088
    %v1116 = vpack.c.bf16 %v1091, %v1090
    %v1117 = vpack.c.bf16 %v1093, %v1092
    %v1118 = vpack.c.bf16 %v1095, %v1094
    %v1119 = vpack.c.bf16 %v1097, %v1096
    %v1120 = vpack.c.bf16 %v1099, %v1098
    %v1121 = vpack.c.bf16 %v1101, %v1100
    %v1122 = vpack.c.bf16 %v1103, %v1102
    %v1123 = vpack.c.bf16 %v1105, %v1104
    %v1124 = vpack.c.bf16 %v1107, %v1106
    %v1125 = vpack.c.bf16 %v1109, %v1108
    %1126 = vmatprep.subr.bf16.mxu0 0
    %1127 = vmatpush1.bf16.msra.mxu0 %v1046
    %1128 = vmatprep.subr.bf16.mxu0 0
    %1129 = vmatpush1.bf16.msra.mxu0 %v1047
    %1130 = vmatprep.subr.bf16.mxu0 0
    %1131 = vmatpush1.bf16.msra.mxu0 %v1048
    %1132 = vmatprep.subr.bf16.mxu0 0
    %1133 = vmatpush1.bf16.msra.mxu0 %v1049
    %1134 = vmatprep.subr.bf16.mxu0 0
    %1135 = vmatpush1.bf16.msra.mxu0 %v1050
    %1136 = vmatprep.subr.bf16.mxu0 0
    %1137 = vmatpush1.bf16.msra.mxu0 %v1051
    %1138 = vmatprep.subr.bf16.mxu0 0
    %1139 = vmatpush1.bf16.msra.mxu0 %v1052
    %1140 = vmatprep.subr.bf16.mxu0 0
    %1141 = vmatpush1.bf16.msra.mxu0 %v1053
    %1142 = vmatprep.subr.bf16.mxu0 0
    %1143 = vmatpush1.bf16.msra.mxu0 %v1054
    %1144 = vmatprep.subr.bf16.mxu0 0
    %1145 = vmatpush1.bf16.msra.mxu0 %v1055
    %1146 = vmatprep.subr.bf16.mxu0 0
    %1147 = vmatpush1.bf16.msra.mxu0 %v1056
    %1148 = vmatprep.subr.bf16.mxu0 0
    %1149 = vmatpush1.bf16.msra.mxu0 %v1057
    %1150 = vmatprep.subr.bf16.mxu0 0
    %1151 = vmatpush1.bf16.msra.mxu0 %v1058
    %1152 = vmatprep.subr.bf16.mxu0 0
    %1153 = vmatpush1.bf16.msra.mxu0 %v1059
    %1154 = vmatprep.subr.bf16.mxu0 0
    %1155 = vmatpush1.bf16.msra.mxu0 %v1060
    %1156 = vmatprep.subr.bf16.mxu0 0
    %1157 = vmatpush1.bf16.msra.mxu0 %v1061
    %1158 = vmatprep.mubr.bf16.mxu0 %v1029
    %1159 = vmatmul.mubr.bf16.gmra.mrb[0].mxu0 %v1028
    %v1160 = vpop.f32.mrb[0].mxu0
    %v1161 = vadd.f32 0.0, %v1160
    %v1162 = vpop.f32.mrb[0].mxu0
    %v1163 = vpop.f32.mrb[0].mxu0
    %v1164 = vadd.f32 0.0, %v1163
    %v1165 = vpop.f32.mrb[0].mxu0
    %1166 = vmatprep.mubr.bf16.mxu0 %v1031
    %1167 = vmatmul.mubr.bf16.gmra.mrb[0].mxu0 %v1030
    %v1168 = vpop.f32.mrb[0].mxu0
    %v1169 = vadd.f32 0.0, %v1168
    %v1170 = vpop.f32.mrb[0].mxu0
    %v1171 = vpop.f32.mrb[0].mxu0
    %v1172 = vpop.f32.mrb[0].mxu0
    %1173 = vdwg.mxu0
    %1174 = vmatprep.subr.bf16.mxu0 0
    %1175 = vmatpush1.bf16.msra.mxu0 %v1062
    %1176 = vmatprep.subr.bf16.mxu0 0
    %1177 = vmatpush1.bf16.msra.mxu0 %v1063
    %1178 = vmatprep.subr.bf16.mxu0 0
    %1179 = vmatpush1.bf16.msra.mxu0 %v1064
    %1180 = vmatprep.subr.bf16.mxu0 0
    %1181 = vmatpush1.bf16.msra.mxu0 %v1065
    %1182 = vmatprep.subr.bf16.mxu0 0
    %1183 = vmatpush1.bf16.msra.mxu0 %v1066
    %1184 = vmatprep.subr.bf16.mxu0 0
    %1185 = vmatpush1.bf16.msra.mxu0 %v1067
    %1186 = vmatprep.subr.bf16.mxu0 0
    %1187 = vmatpush1.bf16.msra.mxu0 %v1068
    %1188 = vmatprep.subr.bf16.mxu0 0
    %1189 = vmatpush1.bf16.msra.mxu0 %v1069
    %1190 = vmatprep.subr.bf16.mxu0 0
    %1191 = vmatpush1.bf16.msra.mxu0 %v1070
    %1192 = vmatprep.subr.bf16.mxu0 0
    %1193 = vmatpush1.bf16.msra.mxu0 %v1071
    %1194 = vmatprep.subr.bf16.mxu0 0
    %1195 = vmatpush1.bf16.msra.mxu0 %v1072
    %1196 = vmatprep.subr.bf16.mxu0 0
    %1197 = vmatpush1.bf16.msra.mxu0 %v1073
    %1198 = vmatprep.subr.bf16.mxu0 0
    %1199 = vmatpush1.bf16.msra.mxu0 %v1074
    %1200 = vmatprep.subr.bf16.mxu0 0
    %1201 = vmatpush1.bf16.msra.mxu0 %v1075
    %1202 = vmatprep.subr.bf16.mxu0 0
    %1203 = vmatpush1.bf16.msra.mxu0 %v1076
    %1204 = vmatprep.subr.bf16.mxu0 0
    %1205 = vmatpush1.bf16.msra.mxu0 %v1077
    %1206 = vmatprep.mubr.bf16.mxu0 %v1033
    %1207 = vmatmul.mubr.bf16.gmra.mrb[0].mxu0 %v1032
    %v1208 = vpop.f32.mrb[0].mxu0
    %v1209 = vadd.f32 0.0, %v1208
    %v1210 = vpop.f32.mrb[0].mxu0
    %v1211 = vpop.f32.mrb[0].mxu0
    %v1212 = vadd.f32 0.0, %v1211
    %v1213 = vpop.f32.mrb[0].mxu0
    %1214 = vmatprep.mubr.bf16.mxu0 %v1035
    %1215 = vmatmul.mubr.bf16.gmra.mrb[0].mxu0 %v1034
    %v1216 = vpop.f32.mrb[0].mxu0
    %v1217 = vadd.f32 0.0, %v1216
    %v1218 = vpop.f32.mrb[0].mxu0
    %v1219 = vpop.f32.mrb[0].mxu0
    %v1220 = vpop.f32.mrb[0].mxu0
    %1221 = vdwg.mxu0
    %1222 = vmatprep.subr.bf16.mxu0 0
    %1223 = vmatpush1.bf16.msra.mxu0 %v1110
    %1224 = vmatprep.subr.bf16.mxu0 0
    %1225 = vmatpush1.bf16.msra.mxu0 %v1111
    %1226 = vmatprep.subr.bf16.mxu0 0
    %1227 = vmatpush1.bf16.msra.mxu0 %v1112
    %1228 = vmatprep.subr.bf16.mxu0 0
    %1229 = vmatpush1.bf16.msra.mxu0 %v1113
    %1230 = vmatprep.subr.bf16.mxu0 0
    %1231 = vmatpush1.bf16.msra.mxu0 %v1114
    %1232 = vmatprep.subr.bf16.mxu0 0
    %1233 = vmatpush1.bf16.msra.mxu0 %v1115
    %1234 = vmatprep.subr.bf16.mxu0 0
    %1235 = vmatpush1.bf16.msra.mxu0 %v1116
    %1236 = vmatprep.subr.bf16.mxu0 0
    %1237 = vmatpush1.bf16.msra.mxu0 %v1117
    %1238 = vmatprep.subr.bf16.mxu0 0
    %1239 = vmatpush1.bf16.msra.mxu0 %v1118
    %1240 = vmatprep.subr.bf16.mxu0 0
    %1241 = vmatpush1.bf16.msra.mxu0 %v1119
    %1242 = vmatprep.subr.bf16.mxu0 0
    %1243 = vmatpush1.bf16.msra.mxu0 %v1120
    %1244 = vmatprep.subr.bf16.mxu0 0
    %1245 = vmatpush1.bf16.msra.mxu0 %v1121
    %1246 = vmatprep.subr.bf16.mxu0 0
    %1247 = vmatpush1.bf16.msra.mxu0 %v1122
    %1248 = vmatprep.subr.bf16.mxu0 0
    %1249 = vmatpush1.bf16.msra.mxu0 %v1123
    %1250 = vmatprep.subr.bf16.mxu0 0
    %1251 = vmatpush1.bf16.msra.mxu0 %v1124
    %1252 = vmatprep.subr.bf16.mxu0 0
    %1253 = vmatpush1.bf16.msra.mxu0 %v1125
    %1254 = vmatprep.mubr.bf16.mxu0 %v1043
    %1255 = vmatmul.mubr.bf16.gmra.mrb[0].mxu0 %v1042
    %v1256 = vpop.f32.mrb[0].mxu0
    %v1257 = vadd.f32 0.0, %v1256
    %v1258 = vpop.f32.mrb[0].mxu0
    %v1259 = vpop.f32.mrb[0].mxu0
    %v1260 = vadd.f32 0.0, %v1259
    %v1261 = vpop.f32.mrb[0].mxu0
    %1262 = vmatprep.mubr.bf16.mxu0 %v1045
    %1263 = vmatmul.mubr.bf16.gmra.mrb[0].mxu0 %v1044
    %v1264 = vpop.f32.mrb[0].mxu0
    %v1265 = vadd.f32 0.0, %v1264
    %v1266 = vpop.f32.mrb[0].mxu0
    %v1267 = vpop.f32.mrb[0].mxu0
    %v1268 = vpop.f32.mrb[0].mxu0
    %1269 = vdwg.mxu0
    %v1270 = vsub.f32 %v1161, %v1209
    %v1271 = vsub.f32 %v1164, %v1212
    %v1272 = vsub.f32 %v1169, %v1217
    %v1273 = vsub.f32 %v1257, %v1161
    %v1274 = vsub.f32 %v1260, %v1164
    %v1275 = vsub.f32 %v1265, %v1169
    %v1276 = vsub.f32 %v1273, %v1209
    %v1277 = vsub.f32 %v1274, %v1212
    %v1278 = vsub.f32 %v1275, %v1217
    %v1279 = vld [vmem:[%s7] sm:$0x1f]
    %v1281 = vsel %vm248, %v1279, 0
    %1283 = vmatprep.subr.mxu0 0.0
    %1284 = vmatpush1.msra.mxu0 %v1281
    %1285 = vmatprep.subr.mxu0 0.0
    %1286 = vmatpush1.msra.mxu0 0.0
    %1287 = vmatprep.subr.mxu0 0.0
    %1288 = vmatpush1.msra.mxu0 0.0
    %1289 = vmatprep.subr.mxu0 0.0
    %1290 = vmatpush1.msra.mxu0 0.0
    %1291 = vmatprep.subr.mxu0 0.0
    %1292 = vmatpush1.msra.mxu0 0.0
    %1293 = vmatprep.subr.mxu0 0.0
    %1294 = vmatpush1.msra.mxu0 0.0
    %1295 = vmatprep.subr.mxu0 0.0
    %1296 = vmatpush1.msra.mxu0 0.0
    %1297 = vmatprep.subr.mxu0 0.0
    %1298 = vmatpush1.msra.mxu0 0.0
    %1299 = vmatprep.subr.mxu0 0.0
    %1300 = vmatpush1.msra.mxu0 0.0
    %1301 = vmatprep.subr.mxu0 0.0
    %1302 = vmatpush1.msra.mxu0 0.0
    %1303 = vmatprep.subr.mxu0 0.0
    %1304 = vmatpush1.msra.mxu0 0.0
    %1305 = vmatprep.subr.mxu0 0.0
    %1306 = vmatpush1.msra.mxu0 0.0
    %1307 = vmatprep.subr.mxu0 0.0
    %1308 = vmatpush1.msra.mxu0 0.0
    %1309 = vmatprep.subr.mxu0 0.0
    %1310 = vmatpush1.msra.mxu0 0.0
    %1311 = vmatprep.subr.mxu0 0.0
    %1312 = vmatpush1.msra.mxu0 0.0
    %1313 = vmatprep.subr.mxu0 0.0
    %1314 = vmatpush1.msra.mxu0 0.0
    %1315 = vmatprep.subr.mxu0 0.0
    %1316 = vmatpush1.msra.mxu0 0.0
    %1317 = vmatprep.subr.mxu0 0.0
    %1318 = vmatpush1.msra.mxu0 0.0
    %1319 = vmatprep.subr.mxu0 0.0
    %1320 = vmatpush1.msra.mxu0 0.0
    %1321 = vmatprep.subr.mxu0 0.0
    %1322 = vmatpush1.msra.mxu0 0.0
    %1323 = vmatprep.subr.mxu0 0.0
    %1324 = vmatpush1.msra.mxu0 0.0
    %1325 = vmatprep.subr.mxu0 0.0
    %1326 = vmatpush1.msra.mxu0 0.0
    %1327 = vmatprep.subr.mxu0 0.0
    %1328 = vmatpush1.msra.mxu0 0.0
    %1329 = vmatprep.subr.mxu0 0.0
    %1330 = vmatpush1.msra.mxu0 0.0
    %1331 = vmatprep.subr.mxu0 0.0
    %1332 = vmatpush1.msra.mxu0 0.0
    %1333 = vmatprep.subr.mxu0 0.0
    %1334 = vmatpush1.msra.mxu0 0.0
    %1335 = vmatprep.subr.mxu0 0.0
    %1336 = vmatpush1.msra.mxu0 0.0
    %1337 = vmatprep.subr.mxu0 0.0
    %1338 = vmatpush1.msra.mxu0 0.0
    %1339 = vmatprep.subr.mxu0 0.0
    %1340 = vmatpush1.msra.mxu0 0.0
    %1341 = vmatprep.subr.mxu0 0.0
    %1342 = vmatpush1.msra.mxu0 0.0
    %1343 = vmatprep.subr.mxu0 0.0
    %1344 = vmatpush1.msra.mxu0 0.0
    %1345 = vmatprep.subr.mxu0 0.0
    %1346 = vmatpush1.msra.mxu0 0.0
    %1347 = vmatprep.mubr.f32.mxu0 0.0
    %1348 = vmatmul.mubr.f32.gmra.mrb[0].mxu0 %v240
    %v1349 = vpop.f32.mrb[0].mxu0
    %v1350 = vadd.f32 0.0, %v1349
    %v1351 = vpop.f32.mrb[0].mxu0
    %1352 = vmatprep.mubr.f32.mxu0 0.0
    %1353 = vmatmul.mubr.f32.gmra.mrb[0].mxu0 %v243
    %v1354 = vpop.f32.mrb[0].mxu0
    %v1355 = vadd.f32 0.0, %v1354
    %v1356 = vpop.f32.mrb[0].mxu0
    %1357 = vmatprep.mubr.f32.mxu0 0.0
    %1358 = vmatmul.mubr.f32.gmra.mrb[0].mxu0 %v246
    %v1359 = vpop.f32.mrb[0].mxu0
    %v1360 = vadd.f32 0.0, %v1359
    %v1361 = vpop.f32.mrb[0].mxu0
    %1362 = vdwg.mxu0
    %s1363 = scalar_lea.vmem %s7, 8
    %v1364 = vld [vmem:[%s1363] sm:$0x1f]
    %v1366 = vsel %vm248, %v1364, 0
    %1368 = vmatprep.subr.mxu0 0.0
    %1369 = vmatpush1.msra.mxu0 %v1366
    %1370 = vmatprep.subr.mxu0 0.0
    %1371 = vmatpush1.msra.mxu0 0.0
    %1372 = vmatprep.subr.mxu0 0.0
    %1373 = vmatpush1.msra.mxu0 0.0
    %1374 = vmatprep.subr.mxu0 0.0
    %1375 = vmatpush1.msra.mxu0 0.0
    %1376 = vmatprep.subr.mxu0 0.0
    %1377 = vmatpush1.msra.mxu0 0.0
    %1378 = vmatprep.subr.mxu0 0.0
    %1379 = vmatpush1.msra.mxu0 0.0
    %1380 = vmatprep.subr.mxu0 0.0
    %1381 = vmatpush1.msra.mxu0 0.0
    %1382 = vmatprep.subr.mxu0 0.0
    %1383 = vmatpush1.msra.mxu0 0.0
    %1384 = vmatprep.subr.mxu0 0.0
    %1385 = vmatpush1.msra.mxu0 0.0
    %1386 = vmatprep.subr.mxu0 0.0
    %1387 = vmatpush1.msra.mxu0 0.0
    %1388 = vmatprep.subr.mxu0 0.0
    %1389 = vmatpush1.msra.mxu0 0.0
    %1390 = vmatprep.subr.mxu0 0.0
    %1391 = vmatpush1.msra.mxu0 0.0
    %1392 = vmatprep.subr.mxu0 0.0
    %1393 = vmatpush1.msra.mxu0 0.0
    %1394 = vmatprep.subr.mxu0 0.0
    %1395 = vmatpush1.msra.mxu0 0.0
    %1396 = vmatprep.subr.mxu0 0.0
    %1397 = vmatpush1.msra.mxu0 0.0
    %1398 = vmatprep.subr.mxu0 0.0
    %1399 = vmatpush1.msra.mxu0 0.0
    %1400 = vmatprep.subr.mxu0 0.0
    %1401 = vmatpush1.msra.mxu0 0.0
    %1402 = vmatprep.subr.mxu0 0.0
    %1403 = vmatpush1.msra.mxu0 0.0
    %1404 = vmatprep.subr.mxu0 0.0
    %1405 = vmatpush1.msra.mxu0 0.0
    %1406 = vmatprep.subr.mxu0 0.0
    %1407 = vmatpush1.msra.mxu0 0.0
    %1408 = vmatprep.subr.mxu0 0.0
    %1409 = vmatpush1.msra.mxu0 0.0
    %1410 = vmatprep.subr.mxu0 0.0
    %1411 = vmatpush1.msra.mxu0 0.0
    %1412 = vmatprep.subr.mxu0 0.0
    %1413 = vmatpush1.msra.mxu0 0.0
    %1414 = vmatprep.subr.mxu0 0.0
    %1415 = vmatpush1.msra.mxu0 0.0
    %1416 = vmatprep.subr.mxu0 0.0
    %1417 = vmatpush1.msra.mxu0 0.0
    %1418 = vmatprep.subr.mxu0 0.0
    %1419 = vmatpush1.msra.mxu0 0.0
    %1420 = vmatprep.subr.mxu0 0.0
    %1421 = vmatpush1.msra.mxu0 0.0
    %1422 = vmatprep.subr.mxu0 0.0
    %1423 = vmatpush1.msra.mxu0 0.0
    %1424 = vmatprep.subr.mxu0 0.0
    %1425 = vmatpush1.msra.mxu0 0.0
    %1426 = vmatprep.subr.mxu0 0.0
    %1427 = vmatpush1.msra.mxu0 0.0
    %1428 = vmatprep.subr.mxu0 0.0
    %1429 = vmatpush1.msra.mxu0 0.0
    %1430 = vmatprep.subr.mxu0 0.0
    %1431 = vmatpush1.msra.mxu0 0.0
    %1432 = vmatprep.mubr.f32.mxu0 0.0
    %1433 = vmatmul.mubr.f32.gmra.mrb[0].mxu0 %v240
    %v1434 = vpop.f32.mrb[0].mxu0
    %v1435 = vadd.f32 0.0, %v1434
    %v1436 = vpop.f32.mrb[0].mxu0
    %1437 = vmatprep.mubr.f32.mxu0 0.0
    %1438 = vmatmul.mubr.f32.gmra.mrb[0].mxu0 %v243
    %v1439 = vpop.f32.mrb[0].mxu0
    %v1440 = vadd.f32 0.0, %v1439
    %v1441 = vpop.f32.mrb[0].mxu0
    %1442 = vmatprep.mubr.f32.mxu0 0.0
    %1443 = vmatmul.mubr.f32.gmra.mrb[0].mxu0 %v246
    %v1444 = vpop.f32.mrb[0].mxu0
    %v1445 = vadd.f32 0.0, %v1444
    %v1446 = vpop.f32.mrb[0].mxu0
    %1447 = vdwg.mxu0
    %v1448 = vmul.f32 %v1270, %v1350
    %v1449 = vmul.f32 %v1271, %v1355
    %v1450 = vmul.f32 %v1272, %v1360
    %v1451 = vmul.f32 %v1276, %v1435
    %v1452 = vmul.f32 %v1277, %v1440
    %v1453 = vmul.f32 %v1278, %v1445
    %v1454 = vsub.f32 %v1448, %v1451
    %v1455 = vsub.f32 %v1449, %v1452
    %v1456 = vsub.f32 %v1450, %v1453
    %v1457 = vmul.f32 %v1270, %v1435
    %v1458 = vmul.f32 %v1271, %v1440
    %v1459 = vmul.f32 %v1272, %v1445
    %v1460 = vmul.f32 %v1276, %v1350
    %v1461 = vmul.f32 %v1277, %v1355
    %v1462 = vmul.f32 %v1278, %v1360
    %v1463 = vadd.f32 %v1457, %v1460
    %v1464 = vadd.f32 %v1458, %v1461
    %v1465 = vadd.f32 %v1459, %v1462
    %v1466 = vld [vmem:[#allocation2] sm:$0xf]
    %vm1467 = vcmask 162816
    %v1469 = vsel %vm1467, %v43, 0
    %v1472 = vsel %vm57, %v1456, 0
    %1474 = vmatprep.subr.mxu0 0.0
    %1475 = vmatpush1.msra.mxu0 %v1454
    %1476 = vmatprep.subr.mxu0 0.0
    %1477 = vmatpush1.msra.mxu0 %v1455
    %1478 = vmatprep.subr.mxu0 0.0
    %1479 = vmatpush1.msra.mxu0 %v1472
    %1480 = vmatprep.subr.mxu0 0.0
    %1481 = vmatpush1.msra.mxu0 0.0
    %1482 = vmatprep.subr.mxu0 0.0
    %1483 = vmatpush1.msra.mxu0 0.0
    %1484 = vmatprep.subr.mxu0 0.0
    %1485 = vmatpush1.msra.mxu0 0.0
    %1486 = vmatprep.subr.mxu0 0.0
    %1487 = vmatpush1.msra.mxu0 0.0
    %1488 = vmatprep.subr.mxu0 0.0
    %1489 = vmatpush1.msra.mxu0 0.0
    %1490 = vmatprep.subr.mxu0 0.0
    %1491 = vmatpush1.msra.mxu0 0.0
    %1492 = vmatprep.subr.mxu0 0.0
    %1493 = vmatpush1.msra.mxu0 0.0
    %1494 = vmatprep.subr.mxu0 0.0
    %1495 = vmatpush1.msra.mxu0 0.0
    %1496 = vmatprep.subr.mxu0 0.0
    %1497 = vmatpush1.msra.mxu0 0.0
    %1498 = vmatprep.subr.mxu0 0.0
    %1499 = vmatpush1.msra.mxu0 0.0
    %1500 = vmatprep.subr.mxu0 0.0
    %1501 = vmatpush1.msra.mxu0 0.0
    %1502 = vmatprep.subr.mxu0 0.0
    %1503 = vmatpush1.msra.mxu0 0.0
    %1504 = vmatprep.subr.mxu0 0.0
    %1505 = vmatpush1.msra.mxu0 0.0
    %1506 = vmatprep.subr.mxu0 0.0
    %1507 = vmatpush1.msra.mxu0 0.0
    %1508 = vmatprep.subr.mxu0 0.0
    %1509 = vmatpush1.msra.mxu0 0.0
    %1510 = vmatprep.subr.mxu0 0.0
    %1511 = vmatpush1.msra.mxu0 0.0
    %1512 = vmatprep.subr.mxu0 0.0
    %1513 = vmatpush1.msra.mxu0 0.0
    %1514 = vmatprep.subr.mxu0 0.0
    %1515 = vmatpush1.msra.mxu0 0.0
    %1516 = vmatprep.subr.mxu0 0.0
    %1517 = vmatpush1.msra.mxu0 0.0
    %1518 = vmatprep.subr.mxu0 0.0
    %1519 = vmatpush1.msra.mxu0 0.0
    %1520 = vmatprep.subr.mxu0 0.0
    %1521 = vmatpush1.msra.mxu0 0.0
    %1522 = vmatprep.subr.mxu0 0.0
    %1523 = vmatpush1.msra.mxu0 0.0
    %1524 = vmatprep.subr.mxu0 0.0
    %1525 = vmatpush1.msra.mxu0 0.0
    %1526 = vmatprep.subr.mxu0 0.0
    %1527 = vmatpush1.msra.mxu0 0.0
    %1528 = vmatprep.subr.mxu0 0.0
    %1529 = vmatpush1.msra.mxu0 0.0
    %1530 = vmatprep.subr.mxu0 0.0
    %1531 = vmatpush1.msra.mxu0 0.0
    %1532 = vmatprep.subr.mxu0 0.0
    %1533 = vmatpush1.msra.mxu0 0.0
    %1534 = vmatprep.subr.mxu0 0.0
    %1535 = vmatpush1.msra.mxu0 0.0
    %1536 = vmatprep.subr.mxu0 0.0
    %1537 = vmatpush1.msra.mxu0 0.0
    %1538 = vmatprep.mubr.f32.mxu0 0.0
    %1539 = vmatmul.mubr.f32.gmra.mrb[0].mxu0 %v1469
    %v1540 = vpop.f32.mrb[0].mxu0
    %v1541 = vadd.f32 0.0, %v1540
    %v1542 = vpop.f32.mrb[0].mxu0
    %1543 = vdwg.mxu0
    %v1544 = vadd.f32 %v1466, %v1541
    %1545 = vst [vmem:[#allocation2] sm:$0xf] %v1544
    %s1546 = scalar_lea.vmem [#allocation2], 4
    %v1547 = vld [vmem:[%s1546] sm:$0xf]
    %v1549 = vsel %vm57, %v1465, 0
    %1551 = vmatprep.subr.mxu0 0.0
    %1552 = vmatpush1.msra.mxu0 %v1463
    %1553 = vmatprep.subr.mxu0 0.0
    %1554 = vmatpush1.msra.mxu0 %v1464
    %1555 = vmatprep.subr.mxu0 0.0
    %1556 = vmatpush1.msra.mxu0 %v1549
    %1557 = vmatprep.subr.mxu0 0.0
    %1558 = vmatpush1.msra.mxu0 0.0
    %1559 = vmatprep.subr.mxu0 0.0
    %1560 = vmatpush1.msra.mxu0 0.0
    %1561 = vmatprep.subr.mxu0 0.0
    %1562 = vmatpush1.msra.mxu0 0.0
    %1563 = vmatprep.subr.mxu0 0.0
    %1564 = vmatpush1.msra.mxu0 0.0
    %1565 = vmatprep.subr.mxu0 0.0
    %1566 = vmatpush1.msra.mxu0 0.0
    %1567 = vmatprep.subr.mxu0 0.0
    %1568 = vmatpush1.msra.mxu0 0.0
    %1569 = vmatprep.subr.mxu0 0.0
    %1570 = vmatpush1.msra.mxu0 0.0
    %1571 = vmatprep.subr.mxu0 0.0
    %1572 = vmatpush1.msra.mxu0 0.0
    %1573 = vmatprep.subr.mxu0 0.0
    %1574 = vmatpush1.msra.mxu0 0.0
    %1575 = vmatprep.subr.mxu0 0.0
    %1576 = vmatpush1.msra.mxu0 0.0
    %1577 = vmatprep.subr.mxu0 0.0
    %1578 = vmatpush1.msra.mxu0 0.0
    %1579 = vmatprep.subr.mxu0 0.0
    %1580 = vmatpush1.msra.mxu0 0.0
    %1581 = vmatprep.subr.mxu0 0.0
    %1582 = vmatpush1.msra.mxu0 0.0
    %1583 = vmatprep.subr.mxu0 0.0
    %1584 = vmatpush1.msra.mxu0 0.0
    %1585 = vmatprep.subr.mxu0 0.0
    %1586 = vmatpush1.msra.mxu0 0.0
    %1587 = vmatprep.subr.mxu0 0.0
    %1588 = vmatpush1.msra.mxu0 0.0
    %1589 = vmatprep.subr.mxu0 0.0
    %1590 = vmatpush1.msra.mxu0 0.0
    %1591 = vmatprep.subr.mxu0 0.0
    %1592 = vmatpush1.msra.mxu0 0.0
    %1593 = vmatprep.subr.mxu0 0.0
    %1594 = vmatpush1.msra.mxu0 0.0
    %1595 = vmatprep.subr.mxu0 0.0
    %1596 = vmatpush1.msra.mxu0 0.0
    %1597 = vmatprep.subr.mxu0 0.0
    %1598 = vmatpush1.msra.mxu0 0.0
    %1599 = vmatprep.subr.mxu0 0.0
    %1600 = vmatpush1.msra.mxu0 0.0
    %1601 = vmatprep.subr.mxu0 0.0
    %1602 = vmatpush1.msra.mxu0 0.0
    %1603 = vmatprep.subr.mxu0 0.0
    %1604 = vmatpush1.msra.mxu0 0.0
    %1605 = vmatprep.subr.mxu0 0.0
    %1606 = vmatpush1.msra.mxu0 0.0
    %1607 = vmatprep.subr.mxu0 0.0
    %1608 = vmatpush1.msra.mxu0 0.0
    %1609 = vmatprep.subr.mxu0 0.0
    %1610 = vmatpush1.msra.mxu0 0.0
    %1611 = vmatprep.subr.mxu0 0.0
    %1612 = vmatpush1.msra.mxu0 0.0
    %1613 = vmatprep.subr.mxu0 0.0
    %1614 = vmatpush1.msra.mxu0 0.0
    %1615 = vmatprep.mubr.f32.mxu0 0.0
    %1616 = vmatmul.mubr.f32.gmra.mrb[0].mxu0 %v1469
    %v1617 = vpop.f32.mrb[0].mxu0
    %v1618 = vadd.f32 0.0, %v1617
    %v1619 = vpop.f32.mrb[0].mxu0
    %1620 = vdwg.mxu0
    %v1621 = vadd.f32 %v1547, %v1618
    %1622 = vst [vmem:[%s1546] sm:$0xf] %v1621
    // Predicated region
    $region38: #{tpu_custom_call.1} parent=1 // pred_check
      _
    $region39: #{tpu_custom_call.1} parent=1 // pred_check_branch
      %1624 = sbr.rel (0) target = $region41
    $region40: #{tpu_custom_call.1} parent=1 // pred_region
      %s1626 = ssub.s32 128, 128
      %1627 = vsyncadd [#allocation3], %s1626
      %s1628 = sshll.u32 [#allocation2], 4
      %s1629 = int_to_ptr.vmem [resolvable:$true] %s1628
      %1634 = dma.vmem_to_hbm [thread:$0]  %s1629, 128, %s8, [#allocation3], 64, 64, 4
    $region41: #{tpu_custom_call.1} parent=1 // pred_fallthru
      _
    // Predicated region
    $region42: #{tpu_custom_call.1} parent=1 // pred_check
      _
    $region43: #{tpu_custom_call.1} parent=1 // pred_check_branch
      %1636 = sbr.rel (0) target = $region45
    $region44: #{tpu_custom_call.1} parent=1 // pred_region
      %1637 = dma.done [#allocation3], 128
    $region45: #{tpu_custom_call.1} parent=1 // pred_fallthru
      _
    %1638 = vsyncpa [#allocation3], 1

</llo_original>
